<compile_context>
chip_gen: v6e
topology: v6e:2x2x1
jax: 0.10.0
libtpu: 0.0.40
codegen_flags: <defaults>
</compile_context>

<pallas_src>
import functools
import math

import jax
import jax.numpy as jnp
from jax.experimental import pallas as pl
from jax.experimental.pallas import tpu as pltpu


# MXU operand dtype (review item 1).  Accumulation is always f32; flip this to
# jnp.float32 if bit-closer parity with the f32 PyTorch reference is required.
MATMUL_INPUT_DTYPE = jnp.bfloat16


# ------------------------------ small helpers -------------------------------

@functools.lru_cache(maxsize=None)
def _vmem_limit_bytes():
    # Budget scoped VMEM from the actual chip (64 MiB on v7x, 128 MiB v5e/v6e),
    # leaving headroom for Mosaic's internal scratch.
    try:
        cap = int(pltpu.get_tpu_info().vmem_capacity_bytes)
    except Exception:
        cap = 64 * 1024 * 1024
    return int(min(cap * 3 // 4, 100 * 1024 * 1024))


def _row_tile(m, target=512):
    # Row (sublane) tile over M = B*S.  Full extent when small (always legal),
    # otherwise a 512-row tile (multiple of 8; padded edge rows are masked on
    # writeback and all kernel math here is row-independent).
    return m if m <= target else target


def _lane_tile(n, target):
    # Largest tile <= target that EXACTLY divides n and is a multiple of 128
    # (used on lane / reduction axes so no padded garbage enters accumulators
    # and stores stay lane-dense).  Falls back to the full extent.
    if n <= target:
        return n
    c = (target // 128) * 128
    while c >= 128:
        if n % c == 0:
            return c
        c -= 128
    return n


def _seq_tile(n, target):
    # Exact divisor of n for the attention q/kv sequence axes (sublane dims):
    # prefer multiples of 128, allow multiples of 8, else full extent.
    if n <= target:
        return n
    for step in (128, 8):
        c = (target // step) * step
        while c >= step:
            if n % c == 0:
                return c
            c -= step
    return n


# ------------------------------ Pallas kernels ------------------------------

def matmul_bias_kernel(x_ref, w_ref, b_ref, o_ref, acc_ref):
    # Fused Q/K/V projection, tiled over M, N and the K (=d_model) reduction
    # axis with a VMEM f32 accumulator (no full-K weight block resident).
    kk = pl.program_id(2)

    @pl.when(kk == 0)
    def _():
        acc_ref[...] = jnp.zeros_like(acc_ref)

    acc_ref[...] += jnp.dot(x_ref[...].astype(MATMUL_INPUT_DTYPE),
                            w_ref[...].astype(MATMUL_INPUT_DTYPE),
                            preferred_element_type=jnp.float32)

    @pl.when(kk == pl.num_programs(2) - 1)
    def _():
        o_ref[...] = acc_ref[...] + b_ref[...]


def flash_attention_kernel(q_ref, k_ref, v_ref, o_ref, m_ref, l_ref, acc_ref):
    # One grid step = one (batch, head, q-tile, kv-tile).  Online softmax with
    # VMEM m/l/acc scratch -> the score tensor only ever exists as (tq, tkv).
    # q has already been scaled by the masked 1/sqrt(dk) factor on the host.
    ki = pl.program_id(3)

    @pl.when(ki == 0)
    def _():
        m_ref[...] = jnp.full(m_ref.shape, -jnp.inf, dtype=jnp.float32)
        l_ref[...] = jnp.zeros_like(l_ref)
        acc_ref[...] = jnp.zeros_like(acc_ref)

    q = q_ref[0, 0].astype(MATMUL_INPUT_DTYPE)        # (tq, dk)
    k = k_ref[0, 0].astype(MATMUL_INPUT_DTYPE)        # (tkv, dk)
    v = v_ref[0, 0].astype(MATMUL_INPUT_DTYPE)        # (tkv, dk)

    s = jax.lax.dot_general(q, k, (((1,), (1,)), ((), ())),
                            preferred_element_type=jnp.float32)   # (tq, tkv)

    m_prev = m_ref[...]                               # (tq, 1)
    m_new = jnp.maximum(m_prev, jnp.max(s, axis=-1, keepdims=True))
    alpha = jnp.exp(m_prev - m_new)
    p = jnp.exp(s - m_new)
    l_ref[...] = alpha * l_ref[...] + jnp.sum(p, axis=-1, keepdims=True)
    acc_ref[...] = alpha * acc_ref[...] + jax.lax.dot_general(
        p.astype(MATMUL_INPUT_DTYPE), v, (((1,), (0,)), ((), ())),
        preferred_element_type=jnp.float32)
    m_ref[...] = m_new

    @pl.when(ki == pl.num_programs(3) - 1)
    def _():
        # Exact divide (review correctness concern re: approx reciprocal).
        o_ref[0, 0] = (acc_ref[...] / l_ref[...]).astype(o_ref.dtype)


def o_proj_add_ln_kernel(a_ref, r_ref, w_ref, b_ref, g_ref, beta_ref,
                         o_ref, acc_ref):
    # W_O projection (tiled over the D reduction axis) fused with residual add
    # + LayerNorm (biased var, eps=1e-5).
    kk = pl.program_id(1)

    @pl.when(kk == 0)
    def _():
        acc_ref[...] = jnp.zeros_like(acc_ref)

    acc_ref[...] += jnp.dot(a_ref[...].astype(MATMUL_INPUT_DTYPE),
                            w_ref[...].astype(MATMUL_INPUT_DTYPE),
                            preferred_element_type=jnp.float32)

    @pl.when(kk == pl.num_programs(1) - 1)
    def _():
        y = acc_ref[...] + b_ref[...] + r_ref[...]
        mean = jnp.mean(y, axis=-1, keepdims=True)
        c = y - mean
        var = jnp.mean(c * c, axis=-1, keepdims=True)
        o_ref[...] = c * jax.lax.rsqrt(var + 1e-5) * g_ref[...] + beta_ref[...]


def ffn_add_ln_kernel(x_ref, w1_ref, b1_ref, w2_ref, b2_ref, g_ref, beta_ref,
                      o_ref, acc_ref):
    # Linear(D->4D) -> ReLU -> Linear(4D->D) -> +residual -> LayerNorm, tiled
    # over d_ff (grid axis 1) with a VMEM f32 accumulator so the (tm, d_ff)
    # intermediate never exists in full.
    kk = pl.program_id(1)

    @pl.when(kk == 0)
    def _():
        acc_ref[...] = jnp.zeros_like(acc_ref)

    x = x_ref[...].astype(MATMUL_INPUT_DTYPE)
    h = jnp.dot(x, w1_ref[...].astype(MATMUL_INPUT_DTYPE),
                preferred_element_type=jnp.float32) + b1_ref[...]
    h = jnp.maximum(h, 0.0)
    acc_ref[...] += jnp.dot(h.astype(MATMUL_INPUT_DTYPE),
                            w2_ref[...].astype(MATMUL_INPUT_DTYPE),
                            preferred_element_type=jnp.float32)

    @pl.when(kk == pl.num_programs(1) - 1)
    def _():
        y = acc_ref[...] + b2_ref[...] + x_ref[...]
        mean = jnp.mean(y, axis=-1, keepdims=True)
        c = y - mean
        var = jnp.mean(c * c, axis=-1, keepdims=True)
        o_ref[...] = c * jax.lax.rsqrt(var + 1e-5) * g_ref[...] + beta_ref[...]


# ------------------------------ thin wrappers --------------------------------

def pallas_qkv_proj(x, w, b):
    m, d_in = x.shape
    d_out = w.shape[1]
    tm = _row_tile(m)
    tn = _lane_tile(d_out, 1024)
    tk = _lane_tile(d_in, 512)
    cost = pl.CostEstimate(
        flops=2 * m * d_in * d_out,
        transcendentals=0,
        bytes_accessed=4 * (m * d_in + d_in * d_out + d_out + m * d_out),
    )
    return pl.pallas_call(
        matmul_bias_kernel,
        out_shape=jax.ShapeDtypeStruct((m, d_out), jnp.float32),
        grid=(pl.cdiv(m, tm), d_out // tn, d_in // tk),
        in_specs=[
            pl.BlockSpec((tm, tk), lambda i, j, kk: (i, kk)),
            pl.BlockSpec((tk, tn), lambda i, j, kk: (kk, j)),
            pl.BlockSpec((1, tn), lambda i, j, kk: (0, j)),
        ],
        out_specs=pl.BlockSpec((tm, tn), lambda i, j, kk: (i, j)),
        scratch_shapes=[pltpu.VMEM((tm, tn), jnp.float32)],
        compiler_params=pltpu.CompilerParams(
            dimension_semantics=("parallel", "parallel", "arbitrary"),
            vmem_limit_bytes=_vmem_limit_bytes()),
        cost_estimate=cost,
    )(x, w, b.reshape(1, d_out))


def pallas_flash_attention(q, k, v):
    # q, k, v: (B, H, S, dk); q is pre-scaled by the masked 1/sqrt(dk) factor.
    # Output: (B, H, S, dk) context; head merge is one XLA transpose outside.
    b, h, s, dk = q.shape
    tq = _seq_tile(s, 256)
    tkv = _seq_tile(s, 256)
    q_spec = pl.BlockSpec((1, 1, tq, dk), lambda bb, hh, qi, ki: (bb, hh, qi, 0))
    kv_spec = pl.BlockSpec((1, 1, tkv, dk), lambda bb, hh, qi, ki: (bb, hh, ki, 0))
    cost = pl.CostEstimate(
        flops=4 * b * h * s * s * dk,
        transcendentals=b * h * s * s,
        bytes_accessed=4 * 4 * b * h * s * dk,
    )
    return pl.pallas_call(
        flash_attention_kernel,
        out_shape=jax.ShapeDtypeStruct((b, h, s, dk), jnp.float32),
        grid=(b, h, s // tq, s // tkv),
        in_specs=[q_spec, kv_spec, kv_spec],
        out_specs=pl.BlockSpec((1, 1, tq, dk),
                               lambda bb, hh, qi, ki: (bb, hh, qi, 0)),
        scratch_shapes=[pltpu.VMEM((tq, 1), jnp.float32),
                        pltpu.VMEM((tq, 1), jnp.float32),
                        pltpu.VMEM((tq, dk), jnp.float32)],
        compiler_params=pltpu.CompilerParams(
            dimension_semantics=("parallel", "parallel", "parallel", "arbitrary"),
            vmem_limit_bytes=_vmem_limit_bytes()),
        cost_estimate=cost,
    )(q, k, v)


def pallas_o_proj_add_ln(attn, resid, w, b, gamma, beta):
    m, d = attn.shape
    tm = _row_tile(m)
    tk = _lane_tile(d, 512)
    cost = pl.CostEstimate(
        flops=2 * m * d * d + 10 * m * d,
        transcendentals=m,
        bytes_accessed=4 * (3 * m * d + d * d + 4 * d),
    )
    return pl.pallas_call(
        o_proj_add_ln_kernel,
        out_shape=jax.ShapeDtypeStruct((m, d), jnp.float32),
        grid=(pl.cdiv(m, tm), d // tk),
        in_specs=[
            pl.BlockSpec((tm, tk), lambda i, kk: (i, kk)),
            pl.BlockSpec((tm, d), lambda i, kk: (i, 0)),
            pl.BlockSpec((tk, d), lambda i, kk: (kk, 0)),
            pl.BlockSpec((1, d), lambda i, kk: (0, 0)),
            pl.BlockSpec((1, d), lambda i, kk: (0, 0)),
            pl.BlockSpec((1, d), lambda i, kk: (0, 0)),
        ],
        out_specs=pl.BlockSpec((tm, d), lambda i, kk: (i, 0)),
        scratch_shapes=[pltpu.VMEM((tm, d), jnp.float32)],
        compiler_params=pltpu.CompilerParams(
            dimension_semantics=("parallel", "arbitrary"),
            vmem_limit_bytes=_vmem_limit_bytes()),
        cost_estimate=cost,
    )(attn, resid, w, b.reshape(1, d), gamma.reshape(1, d), beta.reshape(1, d))


def pallas_ffn_add_ln(x, w1, b1, w2, b2, gamma, beta):
    m, d = x.shape
    d_ff = w1.shape[1]
    tm = _row_tile(m)
    tf = _lane_tile(d_ff, 512)   # must divide d_ff exactly (reduction axis)
    cost = pl.CostEstimate(
        flops=4 * m * d * d_ff + 12 * m * d,
        transcendentals=m,
        bytes_accessed=4 * (2 * m * d + 2 * d * d_ff + d_ff + 5 * d),
    )
    return pl.pallas_call(
        ffn_add_ln_kernel,
        out_shape=jax.ShapeDtypeStruct((m, d), jnp.float32),
        grid=(pl.cdiv(m, tm), d_ff // tf),
        in_specs=[
            pl.BlockSpec((tm, d), lambda i, kk: (i, 0)),
            pl.BlockSpec((d, tf), lambda i, kk: (0, kk)),
            pl.BlockSpec((1, tf), lambda i, kk: (0, kk)),
            pl.BlockSpec((tf, d), lambda i, kk: (kk, 0)),
            pl.BlockSpec((1, d), lambda i, kk: (0, 0)),
            pl.BlockSpec((1, d), lambda i, kk: (0, 0)),
            pl.BlockSpec((1, d), lambda i, kk: (0, 0)),
        ],
        out_specs=pl.BlockSpec((tm, d), lambda i, kk: (i, 0)),
        scratch_shapes=[pltpu.VMEM((tm, d), jnp.float32)],
        compiler_params=pltpu.CompilerParams(
            dimension_semantics=("parallel", "arbitrary"),
            vmem_limit_bytes=_vmem_limit_bytes()),
        cost_estimate=cost,
    )(x, w1, b1.reshape(1, d_ff), w2, b2.reshape(1, d),
      gamma.reshape(1, d), beta.reshape(1, d))


# ------------------------------ parameter init -------------------------------

def init_params(key, num_layers, d_model, num_heads):
    del num_heads
    d_ff = 4 * d_model
    params = []
    for layer in range(num_layers):
        lk = jax.random.fold_in(key, layer)
        ks = jax.random.split(lk, 12)

        def lin_w(kk, din, dout):
            return jax.random.normal(kk, (din, dout), jnp.float32) / jnp.sqrt(
                jnp.float32(din))

        def lin_b(kk, dout):
            return jax.random.normal(kk, (dout,), jnp.float32) * 0.01

        wq, bq = lin_w(ks[0], d_model, d_model), lin_b(ks[1], d_model)
        wk, bk = lin_w(ks[2], d_model, d_model), lin_b(ks[3], d_model)
        wv, bv = lin_w(ks[4], d_model, d_model), lin_b(ks[5], d_model)
        params.append(dict(
            # W_Q | W_K | W_V fused once here (no per-layer concat in forward).
            Wqkv=jnp.concatenate([wq, wk, wv], axis=1),
            bqkv=jnp.concatenate([bq, bk, bv], axis=0),
            Wo=lin_w(ks[6], d_model, d_model), bo=lin_b(ks[7], d_model),
            W1=lin_w(ks[8], d_model, d_ff), b1=lin_b(ks[9], d_ff),
            W2=lin_w(ks[10], d_ff, d_model), b2=lin_b(ks[11], d_model),
            g1=jnp.ones((d_model,), jnp.float32),
            beta1=jnp.zeros((d_model,), jnp.float32),
            g2=jnp.ones((d_model,), jnp.float32),
            beta2=jnp.zeros((d_model,), jnp.float32),
        ))
    return params


# ------------------------------ Encoder forward ------------------------------

def encoder_forward(params, batch_x, padding_mask, dropout_rate, num_heads):
    # dropout_rate accepted but unused, matching the reference forward.
    del dropout_rate
    b, s, d = batch_x.shape
    h = num_heads
    dk = d // h

    # Reference quirk: masked_fill is applied to the sqrt(d_k) *denominator*
    # and depends only on the query row.  Folding a per-query-row factor of 0
    # (else 1/sqrt(dk)) into q is identical up to the sign of zero: masked rows
    # get all-zero scores -> uniform softmax, same as the reference.
    inv_scale = jnp.where(padding_mask == 0, 0.0,
                          1.0 / math.sqrt(dk)).astype(jnp.float32)   # (B, S)

    x = batch_x
    for lp in params:
        x2d = x.reshape(b * s, d)

        # ---- fused Q/K/V projection (reads x from HBM once) ----
        qkv = pallas_qkv_proj(x2d, lp["Wqkv"], lp["bqkv"]).reshape(b, s, 3 * d)

        # ---- ONE fused "weird head split" over the (B,S,3D) tensor ----
        # Equivalent to applying permute(0,2,1).reshape(B,S,H,dk).permute(0,2,1,3)
        # to each of the Q/K/V slices separately (reference quirk).
        t = jnp.transpose(qkv, (0, 2, 1)).reshape(b, 3, s, h, dk)
        t = jnp.transpose(t, (0, 1, 3, 2, 4))          # (B, 3, H, S, dk)
        q, k, v = t[:, 0], t[:, 1], t[:, 2]

        # fold the masked 1/sqrt(dk) factor into q (per query row)
        q = q * inv_scale[:, None, :, None]

        # ---- flash-style attention, (B,H,S,dk) context ----
        ctx = pallas_flash_attention(q, k, v)
        # standard head merge: permute(0,2,1,3).reshape(B,S,D)
        attn = jnp.transpose(ctx, (0, 2, 1, 3)).reshape(b * s, d)

        # ---- W_O projection fused with residual add + LayerNorm1 ----
        x2d = pallas_o_proj_add_ln(attn, x2d, lp["Wo"], lp["bo"],
                                   lp["g1"], lp["beta1"])

        # ---- FFN fused with residual add + LayerNorm2 ----
        x2d = pallas_ffn_add_ln(x2d, lp["W1"], lp["b1"], lp["W2"], lp["b2"],
                                lp["g2"], lp["beta2"])

        x = x2d.reshape(b, s, d)
    return x


# ----------------------------------- main ------------------------------------

if __name__ == "__main__":
    B, S, D, H, L = 2, 8, 32, 4, 2  # batch, seq, d_model, heads, layers

    key = jax.random.PRNGKey(0)
    kx, kp = jax.random.split(key)

    batch_X = jax.random.normal(kx, (B, S, D), jnp.float32)
    padding_mask = jnp.array(
        [[1, 1, 1, 1, 1, 1, 0, 0],
         [1, 1, 1, 1, 1, 1, 1, 1]], dtype=jnp.float32)  # (B, S)
    params = init_params(kp, L, D, H)

    fwd = jax.jit(functools.partial(encoder_forward, num_heads=H))
    out = fwd(params, batch_X, padding_mask, 0.1)
    jax.block_until_ready(out)
    assert out.shape == (B, S, D) and out.dtype == jnp.float32
    assert bool(jnp.all(jnp.isfinite(out)))
    print("KERNEL_OK")
</pallas_src>

<mosaic_0001>
module attributes {stable_mosaic.version = 11 : i64} {
  func.func @matmul_bias_kernel(%arg0: i32, %arg1: i32, %arg2: i32, %arg3: memref<16x32xf32, #tpu.memory_space<vmem>>, %arg4: memref<32x96xf32, #tpu.memory_space<vmem>>, %arg5: memref<1x96xf32, #tpu.memory_space<vmem>>, %arg6: memref<16x96xf32, #tpu.memory_space<vmem>>, %arg7: memref<16x96xf32, #tpu.memory_space<vmem>>) attributes {dimension_semantics = [#tpu.dimension_semantics<parallel>, #tpu.dimension_semantics<parallel>, #tpu.dimension_semantics<arbitrary>], iteration_bounds = array<i64: 1, 1, 1>, scalar_prefetch = 0 : i64, scratch_operands = 1 : i64, tpu.core_type = #tpu.core_type<tc>, window_params = [{transform_indices = @transform_0, window_bounds = array<i64: 16, 32>}, {transform_indices = @transform_1, window_bounds = array<i64: 32, 96>}, {transform_indices = @transform_2, window_bounds = array<i64: 1, 96>}, {transform_indices = @transform_3, window_bounds = array<i64: 16, 96>}]} {
    %c0_i32 = arith.constant 0 : i32
    %0 = arith.cmpi eq, %arg2, %c0_i32 : i32
    %1 = arith.extui %0 : i1 to i32
    %c0_i32_0 = arith.constant 0 : i32
    %2 = arith.cmpi ne, %1, %c0_i32_0 : i32
    scf.if %2 {
      %cst_10 = arith.constant 0.000000e+00 : f32
      %14 = vector.broadcast %cst_10 : f32 to vector<16x96xf32>
      %c0_11 = arith.constant 0 : index
      %c0_12 = arith.constant 0 : index
      %15 = vector.load %arg7[%c0_11, %c0_12] : memref<16x96xf32, #tpu.memory_space<vmem>>, vector<16x96xf32>
      tpu.vector_store %arg7[%c0_11, %c0_12], %14 {strides = array<i32>} : memref<16x96xf32, #tpu.memory_space<vmem>>, vector<16x96xf32>,
    } else {
    }
    %c0 = arith.constant 0 : index
    %c0_1 = arith.constant 0 : index
    %3 = vector.load %arg7[%c0, %c0_1] : memref<16x96xf32, #tpu.memory_space<vmem>>, vector<16x96xf32>
    %c0_2 = arith.constant 0 : index
    %c0_3 = arith.constant 0 : index
    %4 = vector.load %arg3[%c0_2, %c0_3] : memref<16x32xf32, #tpu.memory_space<vmem>>, vector<16x32xf32>
    %5 = arith.truncf %4 : vector<16x32xf32> to vector<16x32xbf16>
    %c0_4 = arith.constant 0 : index
    %c0_5 = arith.constant 0 : index
    %6 = vector.load %arg4[%c0_4, %c0_5] : memref<32x96xf32, #tpu.memory_space<vmem>>, vector<32x96xf32>
    %7 = arith.truncf %6 : vector<32x96xf32> to vector<32x96xbf16>
    %cst = arith.constant dense<0.000000e+00> : vector<16x96xf32>
    %8 = tpu.matmul %5, %7, %cst {dimension_numbers = #tpu.dot_dimension_numbers<[1], [0], [0], [1], [0, 0, 1, 1], [], []>} : vector<16x32xbf16>, vector<32x96xbf16>, vector<16x96xf32> -> vector<16x96xf32>
    %9 = arith.addf %3, %8 : vector<16x96xf32>
    %c0_6 = arith.constant 0 : index
    %c0_7 = arith.constant 0 : index
    %10 = vector.load %arg7[%c0_6, %c0_7] : memref<16x96xf32, #tpu.memory_space<vmem>>, vector<16x96xf32>
    tpu.vector_store %arg7[%c0_6, %c0_7], %9 {strides = array<i32>} : memref<16x96xf32, #tpu.memory_space<vmem>>, vector<16x96xf32>,
    %c0_i32_8 = arith.constant 0 : i32
    %11 = arith.cmpi eq, %arg2, %c0_i32_8 : i32
    %12 = arith.extui %11 : i1 to i32
    %c0_i32_9 = arith.constant 0 : i32
    %13 = arith.cmpi ne, %12, %c0_i32_9 : i32
    scf.if %13 {
      %c0_10 = arith.constant 0 : index
      %c0_11 = arith.constant 0 : index
      %14 = vector.load %arg7[%c0_10, %c0_11] : memref<16x96xf32, #tpu.memory_space<vmem>>, vector<16x96xf32>
      %c0_12 = arith.constant 0 : index
      %c0_13 = arith.constant 0 : index
      %15 = vector.load %arg5[%c0_12, %c0_13] : memref<1x96xf32, #tpu.memory_space<vmem>>, vector<1x96xf32>
      %16 = vector.broadcast %15 : vector<1x96xf32> to vector<16x96xf32>
      %17 = arith.addf %14, %16 : vector<16x96xf32>
      %c0_14 = arith.constant 0 : index
      %c0_15 = arith.constant 0 : index
      %18 = vector.load %arg6[%c0_14, %c0_15] : memref<16x96xf32, #tpu.memory_space<vmem>>, vector<16x96xf32>
      tpu.vector_store %arg6[%c0_14, %c0_15], %17 {strides = array<i32>} : memref<16x96xf32, #tpu.memory_space<vmem>>, vector<16x96xf32>,
    } else {
    }
    return
  }
  func.func @transform_0(%arg0: i32, %arg1: i32, %arg2: i32) -> (i32, i32) {
    %c0_i32 = arith.constant 0 : i32
    return %arg0, %arg2 : i32, i32
  }
  func.func @transform_1(%arg0: i32, %arg1: i32, %arg2: i32) -> (i32, i32) {
    %c0_i32 = arith.constant 0 : i32
    return %arg2, %arg1 : i32, i32
  }
  func.func @transform_2(%arg0: i32, %arg1: i32, %arg2: i32) -> (i32, i32) {
    %c0_i32 = arith.constant 0 : i32
    %c0_i32_0 = arith.constant 0 : i32
    return %c0_i32, %arg1 : i32, i32
  }
  func.func @transform_3(%arg0: i32, %arg1: i32, %arg2: i32) -> (i32, i32) {
    %c0_i32 = arith.constant 0 : i32
    return %arg0, %arg1 : i32, i32
  }
}

module attributes {stable_mosaic.version = 11 : i64} {
  func.func @flash_attention_kernel(%arg0: i32, %arg1: i32, %arg2: i32, %arg3: i32, %arg4: memref<1x1x8x8xf32, #tpu.memory_space<vmem>>, %arg5: memref<1x1x8x8xf32, #tpu.memory_space<vmem>>, %arg6: memref<1x1x8x8xf32, #tpu.memory_space<vmem>>, %arg7: memref<1x1x8x8xf32, #tpu.memory_space<vmem>>, %arg8: memref<8x1xf32, #tpu.memory_space<vmem>>, %arg9: memref<8x1xf32, #tpu.memory_space<vmem>>, %arg10: memref<8x8xf32, #tpu.memory_space<vmem>>) attributes {dimension_semantics = [#tpu.dimension_semantics<parallel>, #tpu.dimension_semantics<parallel>, #tpu.dimension_semantics<parallel>, #tpu.dimension_semantics<arbitrary>], iteration_bounds = array<i64: 2, 4, 1, 1>, scalar_prefetch = 0 : i64, scratch_operands = 3 : i64, tpu.core_type = #tpu.core_type<tc>, window_params = [{transform_indices = @transform_0, window_bounds = array<i64: 1, 1, 8, 8>}, {transform_indices = @transform_1, window_bounds = array<i64: 1, 1, 8, 8>}, {transform_indices = @transform_2, window_bounds = array<i64: 1, 1, 8, 8>}, {transform_indices = @transform_3, window_bounds = array<i64: 1, 1, 8, 8>}]} {
    %c0_i32 = arith.constant 0 : i32
    %0 = arith.cmpi eq, %arg3, %c0_i32 : i32
    %1 = arith.extui %0 : i1 to i32
    %c0_i32_0 = arith.constant 0 : i32
    %2 = arith.cmpi ne, %1, %c0_i32_0 : i32
    scf.if %2 {
      %cst_29 = arith.constant 0xFF800000 : f32
      %39 = vector.broadcast %cst_29 : f32 to vector<8x1xf32>
      %c0_30 = arith.constant 0 : index
      %c0_31 = arith.constant 0 : index
      %40 = vector.load %arg8[%c0_30, %c0_31] : memref<8x1xf32, #tpu.memory_space<vmem>>, vector<8x1xf32>
      tpu.vector_store %arg8[%c0_30, %c0_31], %39 {strides = array<i32>} : memref<8x1xf32, #tpu.memory_space<vmem>>, vector<8x1xf32>,
      %cst_32 = arith.constant 0.000000e+00 : f32
      %41 = vector.broadcast %cst_32 : f32 to vector<8x1xf32>
      %c0_33 = arith.constant 0 : index
      %c0_34 = arith.constant 0 : index
      %42 = vector.load %arg9[%c0_33, %c0_34] : memref<8x1xf32, #tpu.memory_space<vmem>>, vector<8x1xf32>
      tpu.vector_store %arg9[%c0_33, %c0_34], %41 {strides = array<i32>} : memref<8x1xf32, #tpu.memory_space<vmem>>, vector<8x1xf32>,
      %cst_35 = arith.constant 0.000000e+00 : f32
      %43 = vector.broadcast %cst_35 : f32 to vector<8x8xf32>
      %c0_36 = arith.constant 0 : index
      %c0_37 = arith.constant 0 : index
      %44 = vector.load %arg10[%c0_36, %c0_37] : memref<8x8xf32, #tpu.memory_space<vmem>>, vector<8x8xf32>
      tpu.vector_store %arg10[%c0_36, %c0_37], %43 {strides = array<i32>} : memref<8x8xf32, #tpu.memory_space<vmem>>, vector<8x8xf32>,
    } else {
    }
    %c0 = arith.constant 0 : index
    %c0_1 = arith.constant 0 : index
    %c0_2 = arith.constant 0 : index
    %c0_3 = arith.constant 0 : index
    %3 = vector.load %arg4[%c0, %c0_1, %c0_2, %c0_3] : memref<1x1x8x8xf32, #tpu.memory_space<vmem>>, vector<1x1x8x8xf32>
    %4 = vector.shape_cast %3 : vector<1x1x8x8xf32> to vector<8x8xf32>
    %5 = arith.truncf %4 : vector<8x8xf32> to vector<8x8xbf16>
    %c0_4 = arith.constant 0 : index
    %c0_5 = arith.constant 0 : index
    %c0_6 = arith.constant 0 : index
    %c0_7 = arith.constant 0 : index
    %6 = vector.load %arg5[%c0_4, %c0_5, %c0_6, %c0_7] : memref<1x1x8x8xf32, #tpu.memory_space<vmem>>, vector<1x1x8x8xf32>
    %7 = vector.shape_cast %6 : vector<1x1x8x8xf32> to vector<8x8xf32>
    %8 = arith.truncf %7 : vector<8x8xf32> to vector<8x8xbf16>
    %c0_8 = arith.constant 0 : index
    %c0_9 = arith.constant 0 : index
    %c0_10 = arith.constant 0 : index
    %c0_11 = arith.constant 0 : index
    %9 = vector.load %arg6[%c0_8, %c0_9, %c0_10, %c0_11] : memref<1x1x8x8xf32, #tpu.memory_space<vmem>>, vector<1x1x8x8xf32>
    %10 = vector.shape_cast %9 : vector<1x1x8x8xf32> to vector<8x8xf32>
    %11 = arith.truncf %10 : vector<8x8xf32> to vector<8x8xbf16>
    %cst = arith.constant dense<0.000000e+00> : vector<8x8xf32>
    %12 = tpu.matmul %5, %8, %cst {dimension_numbers = #tpu.dot_dimension_numbers<[1], [1], [0], [0], [0, 0, 1, 0], [], []>} : vector<8x8xbf16>, vector<8x8xbf16>, vector<8x8xf32> -> vector<8x8xf32>
    %c0_12 = arith.constant 0 : index
    %c0_13 = arith.constant 0 : index
    %13 = vector.load %arg8[%c0_12, %c0_13] : memref<8x1xf32, #tpu.memory_space<vmem>>, vector<8x1xf32>
    %cst_14 = arith.constant dense<0xFF800000> : vector<8xf32>
    %14 = vector.multi_reduction <maximumf>, %12, %cst_14 [1] : vector<8x8xf32> to vector<8xf32>
    %15 = vector.shape_cast %14 : vector<8xf32> to vector<8x1xf32>
    %16 = arith.maximumf %13, %15 : vector<8x1xf32>
    %17 = arith.subf %13, %16 : vector<8x1xf32>
    %18 = math.exp %17 : vector<8x1xf32>
    %19 = vector.broadcast %16 : vector<8x1xf32> to vector<8x8xf32>
    %20 = arith.subf %12, %19 : vector<8x8xf32>
    %21 = math.exp %20 : vector<8x8xf32>
    %c0_15 = arith.constant 0 : index
    %c0_16 = arith.constant 0 : index
    %22 = vector.load %arg9[%c0_15, %c0_16] : memref<8x1xf32, #tpu.memory_space<vmem>>, vector<8x1xf32>
    %23 = arith.mulf %18, %22 : vector<8x1xf32>
    %cst_17 = arith.constant dense<0.000000e+00> : vector<8xf32>
    %24 = vector.multi_reduction <add>, %21, %cst_17 [1] : vector<8x8xf32> to vector<8xf32>
    %25 = vector.shape_cast %24 : vector<8xf32> to vector<8x1xf32>
    %26 = arith.addf %23, %25 : vector<8x1xf32>
    %c0_18 = arith.constant 0 : index
    %c0_19 = arith.constant 0 : index
    %27 = vector.load %arg9[%c0_18, %c0_19] : memref<8x1xf32, #tpu.memory_space<vmem>>, vector<8x1xf32>
    tpu.vector_store %arg9[%c0_18, %c0_19], %26 {strides = array<i32>} : memref<8x1xf32, #tpu.memory_space<vmem>>, vector<8x1xf32>,
    %c0_20 = arith.constant 0 : index
    %c0_21 = arith.constant 0 : index
    %28 = vector.load %arg10[%c0_20, %c0_21] : memref<8x8xf32, #tpu.memory_space<vmem>>, vector<8x8xf32>
    %29 = vector.broadcast %18 : vector<8x1xf32> to vector<8x8xf32>
    %30 = arith.mulf %29, %28 : vector<8x8xf32>
    %31 = arith.truncf %21 : vector<8x8xf32> to vector<8x8xbf16>
    %cst_22 = arith.constant dense<0.000000e+00> : vector<8x8xf32>
    %32 = tpu.matmul %31, %11, %cst_22 {dimension_numbers = #tpu.dot_dimension_numbers<[1], [0], [0], [1], [0, 0, 1, 1], [], []>} : vector<8x8xbf16>, vector<8x8xbf16>, vector<8x8xf32> -> vector<8x8xf32>
    %33 = arith.addf %30, %32 : vector<8x8xf32>
    %c0_23 = arith.constant 0 : index
    %c0_24 = arith.constant 0 : index
    %34 = vector.load %arg10[%c0_23, %c0_24] : memref<8x8xf32, #tpu.memory_space<vmem>>, vector<8x8xf32>
    tpu.vector_store %arg10[%c0_23, %c0_24], %33 {strides = array<i32>} : memref<8x8xf32, #tpu.memory_space<vmem>>, vector<8x8xf32>,
    %c0_25 = arith.constant 0 : index
    %c0_26 = arith.constant 0 : index
    %35 = vector.load %arg8[%c0_25, %c0_26] : memref<8x1xf32, #tpu.memory_space<vmem>>, vector<8x1xf32>
    tpu.vector_store %arg8[%c0_25, %c0_26], %16 {strides = array<i32>} : memref<8x1xf32, #tpu.memory_space<vmem>>, vector<8x1xf32>,
    %c0_i32_27 = arith.constant 0 : i32
    %36 = arith.cmpi eq, %arg3, %c0_i32_27 : i32
    %37 = arith.extui %36 : i1 to i32
    %c0_i32_28 = arith.constant 0 : i32
    %38 = arith.cmpi ne, %37, %c0_i32_28 : i32
    scf.if %38 {
      %c0_29 = arith.constant 0 : index
      %c0_30 = arith.constant 0 : index
      %39 = vector.load %arg10[%c0_29, %c0_30] : memref<8x8xf32, #tpu.memory_space<vmem>>, vector<8x8xf32>
      %c0_31 = arith.constant 0 : index
      %c0_32 = arith.constant 0 : index
      %40 = vector.load %arg9[%c0_31, %c0_32] : memref<8x1xf32, #tpu.memory_space<vmem>>, vector<8x1xf32>
      %41 = vector.broadcast %40 : vector<8x1xf32> to vector<8x8xf32>
      %42 = arith.divf %39, %41 : vector<8x8xf32>
      %c0_33 = arith.constant 0 : index
      %c0_34 = arith.constant 0 : index
      %c0_35 = arith.constant 0 : index
      %c0_36 = arith.constant 0 : index
      %43 = vector.load %arg7[%c0_33, %c0_34, %c0_35, %c0_36] : memref<1x1x8x8xf32, #tpu.memory_space<vmem>>, vector<1x1x8x8xf32>
      %44 = vector.shape_cast %43 : vector<1x1x8x8xf32> to vector<8x8xf32>
      %45 = vector.shape_cast %42 : vector<8x8xf32> to vector<1x1x8x8xf32>
      tpu.vector_store %arg7[%c0_33, %c0_34, %c0_35, %c0_36], %45 {strides = array<i32>} : memref<1x1x8x8xf32, #tpu.memory_space<vmem>>, vector<1x1x8x8xf32>,
    } else {
    }
    return
  }
  func.func @transform_0(%arg0: i32, %arg1: i32, %arg2: i32, %arg3: i32) -> (i32, i32, i32, i32) {
    %c0_i32 = arith.constant 0 : i32
    %c0_i32_0 = arith.constant 0 : i32
    return %arg0, %arg1, %arg2, %c0_i32 : i32, i32, i32, i32
  }
  func.func @transform_1(%arg0: i32, %arg1: i32, %arg2: i32, %arg3: i32) -> (i32, i32, i32, i32) {
    %c0_i32 = arith.constant 0 : i32
    %c0_i32_0 = arith.constant 0 : i32
    return %arg0, %arg1, %arg3, %c0_i32 : i32, i32, i32, i32
  }
  func.func @transform_2(%arg0: i32, %arg1: i32, %arg2: i32, %arg3: i32) -> (i32, i32, i32, i32) {
    %c0_i32 = arith.constant 0 : i32
    %c0_i32_0 = arith.constant 0 : i32
    return %arg0, %arg1, %arg3, %c0_i32 : i32, i32, i32, i32
  }
  func.func @transform_3(%arg0: i32, %arg1: i32, %arg2: i32, %arg3: i32) -> (i32, i32, i32, i32) {
    %c0_i32 = arith.constant 0 : i32
    %c0_i32_0 = arith.constant 0 : i32
    return %arg0, %arg1, %arg2, %c0_i32 : i32, i32, i32, i32
  }
}

module attributes {stable_mosaic.version = 11 : i64} {
  func.func @o_proj_add_ln_kernel(%arg0: i32, %arg1: i32, %arg2: memref<16x32xf32, #tpu.memory_space<vmem>>, %arg3: memref<16x32xf32, #tpu.memory_space<vmem>>, %arg4: memref<32x32xf32, #tpu.memory_space<vmem>>, %arg5: memref<1x32xf32, #tpu.memory_space<vmem>>, %arg6: memref<1x32xf32, #tpu.memory_space<vmem>>, %arg7: memref<1x32xf32, #tpu.memory_space<vmem>>, %arg8: memref<16x32xf32, #tpu.memory_space<vmem>>, %arg9: memref<16x32xf32, #tpu.memory_space<vmem>>) attributes {dimension_semantics = [#tpu.dimension_semantics<parallel>, #tpu.dimension_semantics<arbitrary>], iteration_bounds = array<i64: 1, 1>, scalar_prefetch = 0 : i64, scratch_operands = 1 : i64, tpu.core_type = #tpu.core_type<tc>, window_params = [{transform_indices = @transform_0, window_bounds = array<i64: 16, 32>}, {transform_indices = @transform_1, window_bounds = array<i64: 16, 32>}, {transform_indices = @transform_2, window_bounds = array<i64: 32, 32>}, {pipeline_mode = #tpu.pipeline_mode<synchronous>, transform_indices = @transform_3, window_bounds = array<i64: 1, 32>}, {pipeline_mode = #tpu.pipeline_mode<synchronous>, transform_indices = @transform_4, window_bounds = array<i64: 1, 32>}, {pipeline_mode = #tpu.pipeline_mode<synchronous>, transform_indices = @transform_5, window_bounds = array<i64: 1, 32>}, {transform_indices = @transform_6, window_bounds = array<i64: 16, 32>}]} {
    %c0_i32 = arith.constant 0 : i32
    %0 = arith.cmpi eq, %arg1, %c0_i32 : i32
    %1 = arith.extui %0 : i1 to i32
    %c0_i32_0 = arith.constant 0 : i32
    %2 = arith.cmpi ne, %1, %c0_i32_0 : i32
    scf.if %2 {
      %cst_10 = arith.constant 0.000000e+00 : f32
      %14 = vector.broadcast %cst_10 : f32 to vector<16x32xf32>
      %c0_11 = arith.constant 0 : index
      %c0_12 = arith.constant 0 : index
      %15 = vector.load %arg9[%c0_11, %c0_12] : memref<16x32xf32, #tpu.memory_space<vmem>>, vector<16x32xf32>
      tpu.vector_store %arg9[%c0_11, %c0_12], %14 {strides = array<i32>} : memref<16x32xf32, #tpu.memory_space<vmem>>, vector<16x32xf32>,
    } else {
    }
    %c0 = arith.constant 0 : index
    %c0_1 = arith.constant 0 : index
    %3 = vector.load %arg9[%c0, %c0_1] : memref<16x32xf32, #tpu.memory_space<vmem>>, vector<16x32xf32>
    %c0_2 = arith.constant 0 : index
    %c0_3 = arith.constant 0 : index
    %4 = vector.load %arg2[%c0_2, %c0_3] : memref<16x32xf32, #tpu.memory_space<vmem>>, vector<16x32xf32>
    %5 = arith.truncf %4 : vector<16x32xf32> to vector<16x32xbf16>
    %c0_4 = arith.constant 0 : index
    %c0_5 = arith.constant 0 : index
    %6 = vector.load %arg4[%c0_4, %c0_5] : memref<32x32xf32, #tpu.memory_space<vmem>>, vector<32x32xf32>
    %7 = arith.truncf %6 : vector<32x32xf32> to vector<32x32xbf16>
    %cst = arith.constant dense<0.000000e+00> : vector<16x32xf32>
    %8 = tpu.matmul %5, %7, %cst {dimension_numbers = #tpu.dot_dimension_numbers<[1], [0], [0], [1], [0, 0, 1, 1], [], []>} : vector<16x32xbf16>, vector<32x32xbf16>, vector<16x32xf32> -> vector<16x32xf32>
    %9 = arith.addf %3, %8 : vector<16x32xf32>
    %c0_6 = arith.constant 0 : index
    %c0_7 = arith.constant 0 : index
    %10 = vector.load %arg9[%c0_6, %c0_7] : memref<16x32xf32, #tpu.memory_space<vmem>>, vector<16x32xf32>
    tpu.vector_store %arg9[%c0_6, %c0_7], %9 {strides = array<i32>} : memref<16x32xf32, #tpu.memory_space<vmem>>, vector<16x32xf32>,
    %c0_i32_8 = arith.constant 0 : i32
    %11 = arith.cmpi eq, %arg1, %c0_i32_8 : i32
    %12 = arith.extui %11 : i1 to i32
    %c0_i32_9 = arith.constant 0 : i32
    %13 = arith.cmpi ne, %12, %c0_i32_9 : i32
    scf.if %13 {
      %c0_10 = arith.constant 0 : index
      %c0_11 = arith.constant 0 : index
      %14 = vector.load %arg9[%c0_10, %c0_11] : memref<16x32xf32, #tpu.memory_space<vmem>>, vector<16x32xf32>
      %c0_12 = arith.constant 0 : index
      %c0_13 = arith.constant 0 : index
      %15 = vector.load %arg5[%c0_12, %c0_13] : memref<1x32xf32, #tpu.memory_space<vmem>>, vector<1x32xf32>
      %16 = vector.broadcast %15 : vector<1x32xf32> to vector<16x32xf32>
      %17 = arith.addf %14, %16 : vector<16x32xf32>
      %c0_14 = arith.constant 0 : index
      %c0_15 = arith.constant 0 : index
      %18 = vector.load %arg3[%c0_14, %c0_15] : memref<16x32xf32, #tpu.memory_space<vmem>>, vector<16x32xf32>
      %19 = arith.addf %17, %18 : vector<16x32xf32>
      %cst_16 = arith.constant dense<0.000000e+00> : vector<16xf32>
      %20 = vector.multi_reduction <add>, %19, %cst_16 [1] : vector<16x32xf32> to vector<16xf32>
      %21 = vector.shape_cast %20 : vector<16xf32> to vector<16x1xf32>
      %cst_17 = arith.constant 3.200000e+01 : f32
      %22 = vector.broadcast %cst_17 : f32 to vector<16x1xf32>
      %23 = arith.divf %21, %22 : vector<16x1xf32>
      %24 = vector.broadcast %23 : vector<16x1xf32> to vector<16x32xf32>
      %25 = arith.subf %19, %24 : vector<16x32xf32>
      %26 = arith.mulf %25, %25 : vector<16x32xf32>
      %cst_18 = arith.constant dense<0.000000e+00> : vector<16xf32>
      %27 = vector.multi_reduction <add>, %26, %cst_18 [1] : vector<16x32xf32> to vector<16xf32>
      %28 = vector.shape_cast %27 : vector<16xf32> to vector<16x1xf32>
      %cst_19 = arith.constant 3.200000e+01 : f32
      %29 = vector.broadcast %cst_19 : f32 to vector<16x1xf32>
      %30 = arith.divf %28, %29 : vector<16x1xf32>
      %cst_20 = arith.constant 9.99999974E-6 : f32
      %31 = vector.broadcast %cst_20 : f32 to vector<16x1xf32>
      %32 = arith.addf %30, %31 : vector<16x1xf32>
      %33 = math.rsqrt %32 : vector<16x1xf32>
      %34 = vector.broadcast %33 : vector<16x1xf32> to vector<16x32xf32>
      %35 = arith.mulf %25, %34 : vector<16x32xf32>
      %c0_21 = arith.constant 0 : index
      %c0_22 = arith.constant 0 : index
      %36 = vector.load %arg6[%c0_21, %c0_22] : memref<1x32xf32, #tpu.memory_space<vmem>>, vector<1x32xf32>
      %37 = vector.broadcast %36 : vector<1x32xf32> to vector<16x32xf32>
      %38 = arith.mulf %35, %37 : vector<16x32xf32>
      %c0_23 = arith.constant 0 : index
      %c0_24 = arith.constant 0 : index
      %39 = vector.load %arg7[%c0_23, %c0_24] : memref<1x32xf32, #tpu.memory_space<vmem>>, vector<1x32xf32>
      %40 = vector.broadcast %39 : vector<1x32xf32> to vector<16x32xf32>
      %41 = arith.addf %38, %40 : vector<16x32xf32>
      %c0_25 = arith.constant 0 : index
      %c0_26 = arith.constant 0 : index
      %42 = vector.load %arg8[%c0_25, %c0_26] : memref<16x32xf32, #tpu.memory_space<vmem>>, vector<16x32xf32>
      tpu.vector_store %arg8[%c0_25, %c0_26], %41 {strides = array<i32>} : memref<16x32xf32, #tpu.memory_space<vmem>>, vector<16x32xf32>,
    } else {
    }
    return
  }
  func.func @transform_0(%arg0: i32, %arg1: i32) -> (i32, i32) {
    %c0_i32 = arith.constant 0 : i32
    return %arg0, %arg1 : i32, i32
  }
  func.func @transform_1(%arg0: i32, %arg1: i32) -> (i32, i32) {
    %c0_i32 = arith.constant 0 : i32
    %c0_i32_0 = arith.constant 0 : i32
    return %arg0, %c0_i32 : i32, i32
  }
  func.func @transform_2(%arg0: i32, %arg1: i32) -> (i32, i32) {
    %c0_i32 = arith.constant 0 : i32
    %c0_i32_0 = arith.constant 0 : i32
    return %arg1, %c0_i32 : i32, i32
  }
  func.func @transform_3(%arg0: i32, %arg1: i32) -> (i32, i32) {
    %c0_i32 = arith.constant 0 : i32
    %c0_i32_0 = arith.constant 0 : i32
    %c0_i32_1 = arith.constant 0 : i32
    return %c0_i32, %c0_i32_0 : i32, i32
  }
  func.func @transform_4(%arg0: i32, %arg1: i32) -> (i32, i32) {
    %c0_i32 = arith.constant 0 : i32
    %c0_i32_0 = arith.constant 0 : i32
    %c0_i32_1 = arith.constant 0 : i32
    return %c0_i32, %c0_i32_0 : i32, i32
  }
  func.func @transform_5(%arg0: i32, %arg1: i32) -> (i32, i32) {
    %c0_i32 = arith.constant 0 : i32
    %c0_i32_0 = arith.constant 0 : i32
    %c0_i32_1 = arith.constant 0 : i32
    return %c0_i32, %c0_i32_0 : i32, i32
  }
  func.func @transform_6(%arg0: i32, %arg1: i32) -> (i32, i32) {
    %c0_i32 = arith.constant 0 : i32
    %c0_i32_0 = arith.constant 0 : i32
    return %arg0, %c0_i32 : i32, i32
  }
}

module attributes {stable_mosaic.version = 11 : i64} {
  func.func @ffn_add_ln_kernel(%arg0: i32, %arg1: i32, %arg2: memref<16x32xf32, #tpu.memory_space<vmem>>, %arg3: memref<32x128xf32, #tpu.memory_space<vmem>>, %arg4: memref<1x128xf32, #tpu.memory_space<vmem>>, %arg5: memref<128x32xf32, #tpu.memory_space<vmem>>, %arg6: memref<1x32xf32, #tpu.memory_space<vmem>>, %arg7: memref<1x32xf32, #tpu.memory_space<vmem>>, %arg8: memref<1x32xf32, #tpu.memory_space<vmem>>, %arg9: memref<16x32xf32, #tpu.memory_space<vmem>>, %arg10: memref<16x32xf32, #tpu.memory_space<vmem>>) attributes {dimension_semantics = [#tpu.dimension_semantics<parallel>, #tpu.dimension_semantics<arbitrary>], iteration_bounds = array<i64: 1, 1>, scalar_prefetch = 0 : i64, scratch_operands = 1 : i64, tpu.core_type = #tpu.core_type<tc>, window_params = [{transform_indices = @transform_0, window_bounds = array<i64: 16, 32>}, {transform_indices = @transform_1, window_bounds = array<i64: 32, 128>}, {transform_indices = @transform_2, window_bounds = array<i64: 1, 128>}, {transform_indices = @transform_3, window_bounds = array<i64: 128, 32>}, {pipeline_mode = #tpu.pipeline_mode<synchronous>, transform_indices = @transform_4, window_bounds = array<i64: 1, 32>}, {pipeline_mode = #tpu.pipeline_mode<synchronous>, transform_indices = @transform_5, window_bounds = array<i64: 1, 32>}, {pipeline_mode = #tpu.pipeline_mode<synchronous>, transform_indices = @transform_6, window_bounds = array<i64: 1, 32>}, {transform_indices = @transform_7, window_bounds = array<i64: 16, 32>}]} {
    %c0_i32 = arith.constant 0 : i32
    %0 = arith.cmpi eq, %arg1, %c0_i32 : i32
    %1 = arith.extui %0 : i1 to i32
    %c0_i32_0 = arith.constant 0 : i32
    %2 = arith.cmpi ne, %1, %c0_i32_0 : i32
    scf.if %2 {
      %cst_16 = arith.constant 0.000000e+00 : f32
      %23 = vector.broadcast %cst_16 : f32 to vector<16x32xf32>
      %c0_17 = arith.constant 0 : index
      %c0_18 = arith.constant 0 : index
      %24 = vector.load %arg10[%c0_17, %c0_18] : memref<16x32xf32, #tpu.memory_space<vmem>>, vector<16x32xf32>
      tpu.vector_store %arg10[%c0_17, %c0_18], %23 {strides = array<i32>} : memref<16x32xf32, #tpu.memory_space<vmem>>, vector<16x32xf32>,
    } else {
    }
    %c0 = arith.constant 0 : index
    %c0_1 = arith.constant 0 : index
    %3 = vector.load %arg2[%c0, %c0_1] : memref<16x32xf32, #tpu.memory_space<vmem>>, vector<16x32xf32>
    %4 = arith.truncf %3 : vector<16x32xf32> to vector<16x32xbf16>
    %c0_2 = arith.constant 0 : index
    %c0_3 = arith.constant 0 : index
    %5 = vector.load %arg3[%c0_2, %c0_3] : memref<32x128xf32, #tpu.memory_space<vmem>>, vector<32x128xf32>
    %6 = arith.truncf %5 : vector<32x128xf32> to vector<32x128xbf16>
    %cst = arith.constant dense<0.000000e+00> : vector<16x128xf32>
    %7 = tpu.matmul %4, %6, %cst {dimension_numbers = #tpu.dot_dimension_numbers<[1], [0], [0], [1], [0, 0, 1, 1], [], []>} : vector<16x32xbf16>, vector<32x128xbf16>, vector<16x128xf32> -> vector<16x128xf32>
    %c0_4 = arith.constant 0 : index
    %c0_5 = arith.constant 0 : index
    %8 = vector.load %arg4[%c0_4, %c0_5] : memref<1x128xf32, #tpu.memory_space<vmem>>, vector<1x128xf32>
    %9 = vector.broadcast %8 : vector<1x128xf32> to vector<16x128xf32>
    %10 = arith.addf %7, %9 : vector<16x128xf32>
    %cst_6 = arith.constant 0.000000e+00 : f32
    %11 = vector.broadcast %cst_6 : f32 to vector<16x128xf32>
    %12 = arith.maximumf %10, %11 : vector<16x128xf32>
    %c0_7 = arith.constant 0 : index
    %c0_8 = arith.constant 0 : index
    %13 = vector.load %arg10[%c0_7, %c0_8] : memref<16x32xf32, #tpu.memory_space<vmem>>, vector<16x32xf32>
    %14 = arith.truncf %12 : vector<16x128xf32> to vector<16x128xbf16>
    %c0_9 = arith.constant 0 : index
    %c0_10 = arith.constant 0 : index
    %15 = vector.load %arg5[%c0_9, %c0_10] : memref<128x32xf32, #tpu.memory_space<vmem>>, vector<128x32xf32>
    %16 = arith.truncf %15 : vector<128x32xf32> to vector<128x32xbf16>
    %cst_11 = arith.constant dense<0.000000e+00> : vector<16x32xf32>
    %17 = tpu.matmul %14, %16, %cst_11 {dimension_numbers = #tpu.dot_dimension_numbers<[1], [0], [0], [1], [0, 0, 1, 1], [], []>} : vector<16x128xbf16>, vector<128x32xbf16>, vector<16x32xf32> -> vector<16x32xf32>
    %18 = arith.addf %13, %17 : vector<16x32xf32>
    %c0_12 = arith.constant 0 : index
    %c0_13 = arith.constant 0 : index
    %19 = vector.load %arg10[%c0_12, %c0_13] : memref<16x32xf32, #tpu.memory_space<vmem>>, vector<16x32xf32>
    tpu.vector_store %arg10[%c0_12, %c0_13], %18 {strides = array<i32>} : memref<16x32xf32, #tpu.memory_space<vmem>>, vector<16x32xf32>,
    %c0_i32_14 = arith.constant 0 : i32
    %20 = arith.cmpi eq, %arg1, %c0_i32_14 : i32
    %21 = arith.extui %20 : i1 to i32
    %c0_i32_15 = arith.constant 0 : i32
    %22 = arith.cmpi ne, %21, %c0_i32_15 : i32
    scf.if %22 {
      %c0_16 = arith.constant 0 : index
      %c0_17 = arith.constant 0 : index
      %23 = vector.load %arg10[%c0_16, %c0_17] : memref<16x32xf32, #tpu.memory_space<vmem>>, vector<16x32xf32>
      %c0_18 = arith.constant 0 : index
      %c0_19 = arith.constant 0 : index
      %24 = vector.load %arg6[%c0_18, %c0_19] : memref<1x32xf32, #tpu.memory_space<vmem>>, vector<1x32xf32>
      %25 = vector.broadcast %24 : vector<1x32xf32> to vector<16x32xf32>
      %26 = arith.addf %23, %25 : vector<16x32xf32>
      %c0_20 = arith.constant 0 : index
      %c0_21 = arith.constant 0 : index
      %27 = vector.load %arg2[%c0_20, %c0_21] : memref<16x32xf32, #tpu.memory_space<vmem>>, vector<16x32xf32>
      %28 = arith.addf %26, %27 : vector<16x32xf32>
      %cst_22 = arith.constant dense<0.000000e+00> : vector<16xf32>
      %29 = vector.multi_reduction <add>, %28, %cst_22 [1] : vector<16x32xf32> to vector<16xf32>
      %30 = vector.shape_cast %29 : vector<16xf32> to vector<16x1xf32>
      %cst_23 = arith.constant 3.200000e+01 : f32
      %31 = vector.broadcast %cst_23 : f32 to vector<16x1xf32>
      %32 = arith.divf %30, %31 : vector<16x1xf32>
      %33 = vector.broadcast %32 : vector<16x1xf32> to vector<16x32xf32>
      %34 = arith.subf %28, %33 : vector<16x32xf32>
      %35 = arith.mulf %34, %34 : vector<16x32xf32>
      %cst_24 = arith.constant dense<0.000000e+00> : vector<16xf32>
      %36 = vector.multi_reduction <add>, %35, %cst_24 [1] : vector<16x32xf32> to vector<16xf32>
      %37 = vector.shape_cast %36 : vector<16xf32> to vector<16x1xf32>
      %cst_25 = arith.constant 3.200000e+01 : f32
      %38 = vector.broadcast %cst_25 : f32 to vector<16x1xf32>
      %39 = arith.divf %37, %38 : vector<16x1xf32>
      %cst_26 = arith.constant 9.99999974E-6 : f32
      %40 = vector.broadcast %cst_26 : f32 to vector<16x1xf32>
      %41 = arith.addf %39, %40 : vector<16x1xf32>
      %42 = math.rsqrt %41 : vector<16x1xf32>
      %43 = vector.broadcast %42 : vector<16x1xf32> to vector<16x32xf32>
      %44 = arith.mulf %34, %43 : vector<16x32xf32>
      %c0_27 = arith.constant 0 : index
      %c0_28 = arith.constant 0 : index
      %45 = vector.load %arg7[%c0_27, %c0_28] : memref<1x32xf32, #tpu.memory_space<vmem>>, vector<1x32xf32>
      %46 = vector.broadcast %45 : vector<1x32xf32> to vector<16x32xf32>
      %47 = arith.mulf %44, %46 : vector<16x32xf32>
      %c0_29 = arith.constant 0 : index
      %c0_30 = arith.constant 0 : index
      %48 = vector.load %arg8[%c0_29, %c0_30] : memref<1x32xf32, #tpu.memory_space<vmem>>, vector<1x32xf32>
      %49 = vector.broadcast %48 : vector<1x32xf32> to vector<16x32xf32>
      %50 = arith.addf %47, %49 : vector<16x32xf32>
      %c0_31 = arith.constant 0 : index
      %c0_32 = arith.constant 0 : index
      %51 = vector.load %arg9[%c0_31, %c0_32] : memref<16x32xf32, #tpu.memory_space<vmem>>, vector<16x32xf32>
      tpu.vector_store %arg9[%c0_31, %c0_32], %50 {strides = array<i32>} : memref<16x32xf32, #tpu.memory_space<vmem>>, vector<16x32xf32>,
    } else {
    }
    return
  }
  func.func @transform_0(%arg0: i32, %arg1: i32) -> (i32, i32) {
    %c0_i32 = arith.constant 0 : i32
    %c0_i32_0 = arith.constant 0 : i32
    return %arg0, %c0_i32 : i32, i32
  }
  func.func @transform_1(%arg0: i32, %arg1: i32) -> (i32, i32) {
    %c0_i32 = arith.constant 0 : i32
    %c0_i32_0 = arith.constant 0 : i32
    return %c0_i32, %arg1 : i32, i32
  }
  func.func @transform_2(%arg0: i32, %arg1: i32) -> (i32, i32) {
    %c0_i32 = arith.constant 0 : i32
    %c0_i32_0 = arith.constant 0 : i32
    return %c0_i32, %arg1 : i32, i32
  }
  func.func @transform_3(%arg0: i32, %arg1: i32) -> (i32, i32) {
    %c0_i32 = arith.constant 0 : i32
    %c0_i32_0 = arith.constant 0 : i32
    return %arg1, %c0_i32 : i32, i32
  }
  func.func @transform_4(%arg0: i32, %arg1: i32) -> (i32, i32) {
    %c0_i32 = arith.constant 0 : i32
    %c0_i32_0 = arith.constant 0 : i32
    %c0_i32_1 = arith.constant 0 : i32
    return %c0_i32, %c0_i32_0 : i32, i32
  }
  func.func @transform_5(%arg0: i32, %arg1: i32) -> (i32, i32) {
    %c0_i32 = arith.constant 0 : i32
    %c0_i32_0 = arith.constant 0 : i32
    %c0_i32_1 = arith.constant 0 : i32
    return %c0_i32, %c0_i32_0 : i32, i32
  }
  func.func @transform_6(%arg0: i32, %arg1: i32) -> (i32, i32) {
    %c0_i32 = arith.constant 0 : i32
    %c0_i32_0 = arith.constant 0 : i32
    %c0_i32_1 = arith.constant 0 : i32
    return %c0_i32, %c0_i32_0 : i32, i32
  }
  func.func @transform_7(%arg0: i32, %arg1: i32) -> (i32, i32) {
    %c0_i32 = arith.constant 0 : i32
    %c0_i32_0 = arith.constant 0 : i32
    return %arg0, %c0_i32 : i32, i32
  }
}

module attributes {stable_mosaic.version = 11 : i64} {
  func.func @matmul_bias_kernel(%arg0: i32, %arg1: i32, %arg2: i32, %arg3: memref<16x32xf32, #tpu.memory_space<vmem>>, %arg4: memref<32x96xf32, #tpu.memory_space<vmem>>, %arg5: memref<1x96xf32, #tpu.memory_space<vmem>>, %arg6: memref<16x96xf32, #tpu.memory_space<vmem>>, %arg7: memref<16x96xf32, #tpu.memory_space<vmem>>) attributes {dimension_semantics = [#tpu.dimension_semantics<parallel>, #tpu.dimension_semantics<parallel>, #tpu.dimension_semantics<arbitrary>], iteration_bounds = array<i64: 1, 1, 1>, scalar_prefetch = 0 : i64, scratch_operands = 1 : i64, tpu.core_type = #tpu.core_type<tc>, window_params = [{transform_indices = @transform_0, window_bounds = array<i64: 16, 32>}, {transform_indices = @transform_1, window_bounds = array<i64: 32, 96>}, {transform_indices = @transform_2, window_bounds = array<i64: 1, 96>}, {transform_indices = @transform_3, window_bounds = array<i64: 16, 96>}]} {
    %c0_i32 = arith.constant 0 : i32
    %0 = arith.cmpi eq, %arg2, %c0_i32 : i32
    %1 = arith.extui %0 : i1 to i32
    %c0_i32_0 = arith.constant 0 : i32
    %2 = arith.cmpi ne, %1, %c0_i32_0 : i32
    scf.if %2 {
      %cst_10 = arith.constant 0.000000e+00 : f32
      %14 = vector.broadcast %cst_10 : f32 to vector<16x96xf32>
      %c0_11 = arith.constant 0 : index
      %c0_12 = arith.constant 0 : index
      %15 = vector.load %arg7[%c0_11, %c0_12] : memref<16x96xf32, #tpu.memory_space<vmem>>, vector<16x96xf32>
      tpu.vector_store %arg7[%c0_11, %c0_12], %14 {strides = array<i32>} : memref<16x96xf32, #tpu.memory_space<vmem>>, vector<16x96xf32>,
    } else {
    }
    %c0 = arith.constant 0 : index
    %c0_1 = arith.constant 0 : index
    %3 = vector.load %arg7[%c0, %c0_1] : memref<16x96xf32, #tpu.memory_space<vmem>>, vector<16x96xf32>
    %c0_2 = arith.constant 0 : index
    %c0_3 = arith.constant 0 : index
    %4 = vector.load %arg3[%c0_2, %c0_3] : memref<16x32xf32, #tpu.memory_space<vmem>>, vector<16x32xf32>
    %5 = arith.truncf %4 : vector<16x32xf32> to vector<16x32xbf16>
    %c0_4 = arith.constant 0 : index
    %c0_5 = arith.constant 0 : index
    %6 = vector.load %arg4[%c0_4, %c0_5] : memref<32x96xf32, #tpu.memory_space<vmem>>, vector<32x96xf32>
    %7 = arith.truncf %6 : vector<32x96xf32> to vector<32x96xbf16>
    %cst = arith.constant dense<0.000000e+00> : vector<16x96xf32>
    %8 = tpu.matmul %5, %7, %cst {dimension_numbers = #tpu.dot_dimension_numbers<[1], [0], [0], [1], [0, 0, 1, 1], [], []>} : vector<16x32xbf16>, vector<32x96xbf16>, vector<16x96xf32> -> vector<16x96xf32>
    %9 = arith.addf %3, %8 : vector<16x96xf32>
    %c0_6 = arith.constant 0 : index
    %c0_7 = arith.constant 0 : index
    %10 = vector.load %arg7[%c0_6, %c0_7] : memref<16x96xf32, #tpu.memory_space<vmem>>, vector<16x96xf32>
    tpu.vector_store %arg7[%c0_6, %c0_7], %9 {strides = array<i32>} : memref<16x96xf32, #tpu.memory_space<vmem>>, vector<16x96xf32>,
    %c0_i32_8 = arith.constant 0 : i32
    %11 = arith.cmpi eq, %arg2, %c0_i32_8 : i32
    %12 = arith.extui %11 : i1 to i32
    %c0_i32_9 = arith.constant 0 : i32
    %13 = arith.cmpi ne, %12, %c0_i32_9 : i32
    scf.if %13 {
      %c0_10 = arith.constant 0 : index
      %c0_11 = arith.constant 0 : index
      %14 = vector.load %arg7[%c0_10, %c0_11] : memref<16x96xf32, #tpu.memory_space<vmem>>, vector<16x96xf32>
      %c0_12 = arith.constant 0 : index
      %c0_13 = arith.constant 0 : index
      %15 = vector.load %arg5[%c0_12, %c0_13] : memref<1x96xf32, #tpu.memory_space<vmem>>, vector<1x96xf32>
      %16 = vector.broadcast %15 : vector<1x96xf32> to vector<16x96xf32>
      %17 = arith.addf %14, %16 : vector<16x96xf32>
      %c0_14 = arith.constant 0 : index
      %c0_15 = arith.constant 0 : index
      %18 = vector.load %arg6[%c0_14, %c0_15] : memref<16x96xf32, #tpu.memory_space<vmem>>, vector<16x96xf32>
      tpu.vector_store %arg6[%c0_14, %c0_15], %17 {strides = array<i32>} : memref<16x96xf32, #tpu.memory_space<vmem>>, vector<16x96xf32>,
    } else {
    }
    return
  }
  func.func @transform_0(%arg0: i32, %arg1: i32, %arg2: i32) -> (i32, i32) {
    %c0_i32 = arith.constant 0 : i32
    return %arg0, %arg2 : i32, i32
  }
  func.func @transform_1(%arg0: i32, %arg1: i32, %arg2: i32) -> (i32, i32) {
    %c0_i32 = arith.constant 0 : i32
    return %arg2, %arg1 : i32, i32
  }
  func.func @transform_2(%arg0: i32, %arg1: i32, %arg2: i32) -> (i32, i32) {
    %c0_i32 = arith.constant 0 : i32
    %c0_i32_0 = arith.constant 0 : i32
    return %c0_i32, %arg1 : i32, i32
  }
  func.func @transform_3(%arg0: i32, %arg1: i32, %arg2: i32) -> (i32, i32) {
    %c0_i32 = arith.constant 0 : i32
    return %arg0, %arg1 : i32, i32
  }
}

module attributes {stable_mosaic.version = 11 : i64} {
  func.func @ffn_add_ln_kernel(%arg0: i32, %arg1: i32, %arg2: memref<16x32xf32, #tpu.memory_space<vmem>>, %arg3: memref<32x128xf32, #tpu.memory_space<vmem>>, %arg4: memref<1x128xf32, #tpu.memory_space<vmem>>, %arg5: memref<128x32xf32, #tpu.memory_space<vmem>>, %arg6: memref<1x32xf32, #tpu.memory_space<vmem>>, %arg7: memref<1x32xf32, #tpu.memory_space<vmem>>, %arg8: memref<1x32xf32, #tpu.memory_space<vmem>>, %arg9: memref<16x32xf32, #tpu.memory_space<vmem>>, %arg10: memref<16x32xf32, #tpu.memory_space<vmem>>) attributes {dimension_semantics = [#tpu.dimension_semantics<parallel>, #tpu.dimension_semantics<arbitrary>], iteration_bounds = array<i64: 1, 1>, scalar_prefetch = 0 : i64, scratch_operands = 1 : i64, tpu.core_type = #tpu.core_type<tc>, window_params = [{transform_indices = @transform_0, window_bounds = array<i64: 16, 32>}, {transform_indices = @transform_1, window_bounds = array<i64: 32, 128>}, {transform_indices = @transform_2, window_bounds = array<i64: 1, 128>}, {transform_indices = @transform_3, window_bounds = array<i64: 128, 32>}, {pipeline_mode = #tpu.pipeline_mode<synchronous>, transform_indices = @transform_4, window_bounds = array<i64: 1, 32>}, {pipeline_mode = #tpu.pipeline_mode<synchronous>, transform_indices = @transform_5, window_bounds = array<i64: 1, 32>}, {pipeline_mode = #tpu.pipeline_mode<synchronous>, transform_indices = @transform_6, window_bounds = array<i64: 1, 32>}, {transform_indices = @transform_7, window_bounds = array<i64: 16, 32>}]} {
    %c0_i32 = arith.constant 0 : i32
    %0 = arith.cmpi eq, %arg1, %c0_i32 : i32
    %1 = arith.extui %0 : i1 to i32
    %c0_i32_0 = arith.constant 0 : i32
    %2 = arith.cmpi ne, %1, %c0_i32_0 : i32
    scf.if %2 {
      %cst_16 = arith.constant 0.000000e+00 : f32
      %23 = vector.broadcast %cst_16 : f32 to vector<16x32xf32>
      %c0_17 = arith.constant 0 : index
      %c0_18 = arith.constant 0 : index
      %24 = vector.load %arg10[%c0_17, %c0_18] : memref<16x32xf32, #tpu.memory_space<vmem>>, vector<16x32xf32>
      tpu.vector_store %arg10[%c0_17, %c0_18], %23 {strides = array<i32>} : memref<16x32xf32, #tpu.memory_space<vmem>>, vector<16x32xf32>,
    } else {
    }
    %c0 = arith.constant 0 : index
    %c0_1 = arith.constant 0 : index
    %3 = vector.load %arg2[%c0, %c0_1] : memref<16x32xf32, #tpu.memory_space<vmem>>, vector<16x32xf32>
    %4 = arith.truncf %3 : vector<16x32xf32> to vector<16x32xbf16>
    %c0_2 = arith.constant 0 : index
    %c0_3 = arith.constant 0 : index
    %5 = vector.load %arg3[%c0_2, %c0_3] : memref<32x128xf32, #tpu.memory_space<vmem>>, vector<32x128xf32>
    %6 = arith.truncf %5 : vector<32x128xf32> to vector<32x128xbf16>
    %cst = arith.constant dense<0.000000e+00> : vector<16x128xf32>
    %7 = tpu.matmul %4, %6, %cst {dimension_numbers = #tpu.dot_dimension_numbers<[1], [0], [0], [1], [0, 0, 1, 1], [], []>} : vector<16x32xbf16>, vector<32x128xbf16>, vector<16x128xf32> -> vector<16x128xf32>
    %c0_4 = arith.constant 0 : index
    %c0_5 = arith.constant 0 : index
    %8 = vector.load %arg4[%c0_4, %c0_5] : memref<1x128xf32, #tpu.memory_space<vmem>>, vector<1x128xf32>
    %9 = vector.broadcast %8 : vector<1x128xf32> to vector<16x128xf32>
    %10 = arith.addf %7, %9 : vector<16x128xf32>
    %cst_6 = arith.constant 0.000000e+00 : f32
    %11 = vector.broadcast %cst_6 : f32 to vector<16x128xf32>
    %12 = arith.maximumf %10, %11 : vector<16x128xf32>
    %c0_7 = arith.constant 0 : index
    %c0_8 = arith.constant 0 : index
    %13 = vector.load %arg10[%c0_7, %c0_8] : memref<16x32xf32, #tpu.memory_space<vmem>>, vector<16x32xf32>
    %14 = arith.truncf %12 : vector<16x128xf32> to vector<16x128xbf16>
    %c0_9 = arith.constant 0 : index
    %c0_10 = arith.constant 0 : index
    %15 = vector.load %arg5[%c0_9, %c0_10] : memref<128x32xf32, #tpu.memory_space<vmem>>, vector<128x32xf32>
    %16 = arith.truncf %15 : vector<128x32xf32> to vector<128x32xbf16>
    %cst_11 = arith.constant dense<0.000000e+00> : vector<16x32xf32>
    %17 = tpu.matmul %14, %16, %cst_11 {dimension_numbers = #tpu.dot_dimension_numbers<[1], [0], [0], [1], [0, 0, 1, 1], [], []>} : vector<16x128xbf16>, vector<128x32xbf16>, vector<16x32xf32> -> vector<16x32xf32>
    %18 = arith.addf %13, %17 : vector<16x32xf32>
    %c0_12 = arith.constant 0 : index
    %c0_13 = arith.constant 0 : index
    %19 = vector.load %arg10[%c0_12, %c0_13] : memref<16x32xf32, #tpu.memory_space<vmem>>, vector<16x32xf32>
    tpu.vector_store %arg10[%c0_12, %c0_13], %18 {strides = array<i32>} : memref<16x32xf32, #tpu.memory_space<vmem>>, vector<16x32xf32>,
    %c0_i32_14 = arith.constant 0 : i32
    %20 = arith.cmpi eq, %arg1, %c0_i32_14 : i32
    %21 = arith.extui %20 : i1 to i32
    %c0_i32_15 = arith.constant 0 : i32
    %22 = arith.cmpi ne, %21, %c0_i32_15 : i32
    scf.if %22 {
      %c0_16 = arith.constant 0 : index
      %c0_17 = arith.constant 0 : index
      %23 = vector.load %arg10[%c0_16, %c0_17] : memref<16x32xf32, #tpu.memory_space<vmem>>, vector<16x32xf32>
      %c0_18 = arith.constant 0 : index
      %c0_19 = arith.constant 0 : index
      %24 = vector.load %arg6[%c0_18, %c0_19] : memref<1x32xf32, #tpu.memory_space<vmem>>, vector<1x32xf32>
      %25 = vector.broadcast %24 : vector<1x32xf32> to vector<16x32xf32>
      %26 = arith.addf %23, %25 : vector<16x32xf32>
      %c0_20 = arith.constant 0 : index
      %c0_21 = arith.constant 0 : index
      %27 = vector.load %arg2[%c0_20, %c0_21] : memref<16x32xf32, #tpu.memory_space<vmem>>, vector<16x32xf32>
      %28 = arith.addf %26, %27 : vector<16x32xf32>
      %cst_22 = arith.constant dense<0.000000e+00> : vector<16xf32>
      %29 = vector.multi_reduction <add>, %28, %cst_22 [1] : vector<16x32xf32> to vector<16xf32>
      %30 = vector.shape_cast %29 : vector<16xf32> to vector<16x1xf32>
      %cst_23 = arith.constant 3.200000e+01 : f32
      %31 = vector.broadcast %cst_23 : f32 to vector<16x1xf32>
      %32 = arith.divf %30, %31 : vector<16x1xf32>
      %33 = vector.broadcast %32 : vector<16x1xf32> to vector<16x32xf32>
      %34 = arith.subf %28, %33 : vector<16x32xf32>
      %35 = arith.mulf %34, %34 : vector<16x32xf32>
      %cst_24 = arith.constant dense<0.000000e+00> : vector<16xf32>
      %36 = vector.multi_reduction <add>, %35, %cst_24 [1] : vector<16x32xf32> to vector<16xf32>
      %37 = vector.shape_cast %36 : vector<16xf32> to vector<16x1xf32>
      %cst_25 = arith.constant 3.200000e+01 : f32
      %38 = vector.broadcast %cst_25 : f32 to vector<16x1xf32>
      %39 = arith.divf %37, %38 : vector<16x1xf32>
      %cst_26 = arith.constant 9.99999974E-6 : f32
      %40 = vector.broadcast %cst_26 : f32 to vector<16x1xf32>
      %41 = arith.addf %39, %40 : vector<16x1xf32>
      %42 = math.rsqrt %41 : vector<16x1xf32>
      %43 = vector.broadcast %42 : vector<16x1xf32> to vector<16x32xf32>
      %44 = arith.mulf %34, %43 : vector<16x32xf32>
      %c0_27 = arith.constant 0 : index
      %c0_28 = arith.constant 0 : index
      %45 = vector.load %arg7[%c0_27, %c0_28] : memref<1x32xf32, #tpu.memory_space<vmem>>, vector<1x32xf32>
      %46 = vector.broadcast %45 : vector<1x32xf32> to vector<16x32xf32>
      %47 = arith.mulf %44, %46 : vector<16x32xf32>
      %c0_29 = arith.constant 0 : index
      %c0_30 = arith.constant 0 : index
      %48 = vector.load %arg8[%c0_29, %c0_30] : memref<1x32xf32, #tpu.memory_space<vmem>>, vector<1x32xf32>
      %49 = vector.broadcast %48 : vector<1x32xf32> to vector<16x32xf32>
      %50 = arith.addf %47, %49 : vector<16x32xf32>
      %c0_31 = arith.constant 0 : index
      %c0_32 = arith.constant 0 : index
      %51 = vector.load %arg9[%c0_31, %c0_32] : memref<16x32xf32, #tpu.memory_space<vmem>>, vector<16x32xf32>
      tpu.vector_store %arg9[%c0_31, %c0_32], %50 {strides = array<i32>} : memref<16x32xf32, #tpu.memory_space<vmem>>, vector<16x32xf32>,
    } else {
    }
    return
  }
  func.func @transform_0(%arg0: i32, %arg1: i32) -> (i32, i32) {
    %c0_i32 = arith.constant 0 : i32
    %c0_i32_0 = arith.constant 0 : i32
    return %arg0, %c0_i32 : i32, i32
  }
  func.func @transform_1(%arg0: i32, %arg1: i32) -> (i32, i32) {
    %c0_i32 = arith.constant 0 : i32
    %c0_i32_0 = arith.constant 0 : i32
    return %c0_i32, %arg1 : i32, i32
  }
  func.func @transform_2(%arg0: i32, %arg1: i32) -> (i32, i32) {
    %c0_i32 = arith.constant 0 : i32
    %c0_i32_0 = arith.constant 0 : i32
    return %c0_i32, %arg1 : i32, i32
  }
  func.func @transform_3(%arg0: i32, %arg1: i32) -> (i32, i32) {
    %c0_i32 = arith.constant 0 : i32
    %c0_i32_0 = arith.constant 0 : i32
    return %arg1, %c0_i32 : i32, i32
  }
  func.func @transform_4(%arg0: i32, %arg1: i32) -> (i32, i32) {
    %c0_i32 = arith.constant 0 : i32
    %c0_i32_0 = arith.constant 0 : i32
    %c0_i32_1 = arith.constant 0 : i32
    return %c0_i32, %c0_i32_0 : i32, i32
  }
  func.func @transform_5(%arg0: i32, %arg1: i32) -> (i32, i32) {
    %c0_i32 = arith.constant 0 : i32
    %c0_i32_0 = arith.constant 0 : i32
    %c0_i32_1 = arith.constant 0 : i32
    return %c0_i32, %c0_i32_0 : i32, i32
  }
  func.func @transform_6(%arg0: i32, %arg1: i32) -> (i32, i32) {
    %c0_i32 = arith.constant 0 : i32
    %c0_i32_0 = arith.constant 0 : i32
    %c0_i32_1 = arith.constant 0 : i32
    return %c0_i32, %c0_i32_0 : i32, i32
  }
  func.func @transform_7(%arg0: i32, %arg1: i32) -> (i32, i32) {
    %c0_i32 = arith.constant 0 : i32
    %c0_i32_0 = arith.constant 0 : i32
    return %arg0, %c0_i32 : i32, i32
  }
}

</mosaic_0001>

<llo_original>
// kernel: encoder_forward.8
$region0: #{encoder_forward.8}
  #allocation0 [shape = 'u32[]', space=smem, size = 0x4, offset = 0x4, fixed_abs, tag = 'smem constant byte address 0x4 - core index']
  #allocation1 [shape = 'u32[144,128]{1,0:T(1,128)}', space=vmem, size = 0x12000, scoped, tag = 'internal scratch']
  #allocation2 [shape = 'f32[16,96]{1,0:T(8,128)}', space=vmem, size = 0x2000, scoped, tag = 'scratch operand']
  %s0 = inlined_call_operand.vmem [shape: f32[16,32], index: 0, kind: input, shape index: {}]
  %s1 = inlined_call_operand.hbm [shape: f32[32,96], index: 1, kind: input, shape index: {}]
  %s2 = inlined_call_operand.vmem [shape: f32[1,96], index: 2, kind: input, shape index: {}]
  %s3 = inlined_call_operand.vmem [shape: f32[16,96], index: 3, kind: output, shape index: {}]
  %s4 = sld [smem:[#allocation0]]
  $region34: #{encoder_forward.8} parent=0
    _
  %s6 = ssub.s32 1, %s4
  %s7 = scalar_select 0, %s6, %s4
  $region1: #{encoder_forward.8} parent=0
    #allocation3 [shape = 'u8[16384]{0}', space=vmem, size = 0x4000, scoped, tag = 'input window, operand 1, single buffered']
    #allocation4 [shape = 's32[1]{0}', space=sflag, size = 0x4, scoped, tag = 'scoped memory for encoder_forward.8']
    %8 = vsyncpa [#allocation4], 0
    // Predicated region
    $region2: #{encoder_forward.8} parent=1 // pred_check
      _
    $region3: #{encoder_forward.8} parent=1 // pred_check_branch
      %10 = sbr.rel (0) target = $region5
    $region4: #{encoder_forward.8} parent=1 // pred_region
      _
    $region5: #{encoder_forward.8} parent=1 // pred_fallthru
      _
    // Predicated region
    $region6: #{encoder_forward.8} parent=1 // pred_check
      _
    $region7: #{encoder_forward.8} parent=1 // pred_check_branch
      %12 = sbr.rel (0) target = $region9
    $region8: #{encoder_forward.8} parent=1 // pred_region
      %s14 = ssub.s32 512, 512
      %15 = vsyncadd [#allocation4], %s14
      %s16 = sshll.u32 [#allocation3], 4
      %s17 = int_to_ptr.vmem [resolvable:$true] %s16
      %22 = dma.hbm_to_vmem [thread:$0]  %s1, 512, %s17, [#allocation4], 128, 128, 8
    $region9: #{encoder_forward.8} parent=1 // pred_fallthru
      _
    // Predicated region
    $region10: #{encoder_forward.8} parent=1 // pred_check
      _
    $region11: #{encoder_forward.8} parent=1 // pred_check_branch
      %24 = sbr.rel (0) target = $region13
    $region12: #{encoder_forward.8} parent=1 // pred_region
      _
    $region13: #{encoder_forward.8} parent=1 // pred_fallthru
      _
    // Predicated region
    $region14: #{encoder_forward.8} parent=1 // pred_check
      _
    $region15: #{encoder_forward.8} parent=1 // pred_check_branch
      %26 = sbr.rel (0) target = $region17
    $region16: #{encoder_forward.8} parent=1 // pred_region
      %27 = dma.done [#allocation4], 512
    $region17: #{encoder_forward.8} parent=1 // pred_fallthru
      _
    %p29 = scmp.eq.s32.totalorder 0, 0
    // Predicated region
    $region18: #{encoder_forward.8} parent=1 // pred_check
      %p30 = pneg %p29
    $region19: #{encoder_forward.8} parent=1 // pred_check_branch
      %32 = sbr.rel (%p30) target = $region21
    $region20: #{encoder_forward.8} parent=1 // pred_region
      %vm33 = vcmask 785408
      %34 = vst.msk [vmem:[#allocation2] sm:$0xff] %vm33, 0.0
      %35 = vst.msk [vmem:[#allocation2 + $0x8] sm:$0xff] %vm33, 0.0
    $region21: #{encoder_forward.8} parent=1 // pred_fallthru
      _
    %v36 = vld [vmem:[#allocation2] sm:$0xff]
    %v37 = vld [vmem:[#allocation2 + $0x8] sm:$0xff]
    %v38 = vld [vmem:[%s0] sm:$0xff]
    %v39 = vld [vmem:[%s0 + $0x8] sm:$0xff]
    %v40 = vpack.c.bf16 %v39, %v38
    %v41 = vld [vmem:[#allocation3] sm:$0xff]
    %v42 = vld [vmem:[#allocation3 + $0x8] sm:$0xff]
    %v43 = vld [vmem:[#allocation3 + $0x10] sm:$0xff]
    %v44 = vld [vmem:[#allocation3 + $0x18] sm:$0xff]
    %v45 = vpack.c.bf16 %v42, %v41
    %v46 = vpack.c.bf16 %v44, %v43
    %vm47 = vcmask 261120
    %v49 = vsel %vm47, %v40, 0
    %51 = vmatprep.subr.bf16.mxu0 0
    %52 = vmatpush1.bf16.msra.mxu0 0
    %53 = vmatprep.subr.bf16.mxu0 0
    %54 = vmatpush1.bf16.msra.mxu0 0
    %55 = vmatprep.subr.bf16.mxu0 0
    %56 = vmatpush1.bf16.msra.mxu0 0
    %57 = vmatprep.subr.bf16.mxu0 0
    %58 = vmatpush1.bf16.msra.mxu0 0
    %59 = vmatprep.subr.bf16.mxu0 0
    %60 = vmatpush1.bf16.msra.mxu0 0
    %61 = vmatprep.subr.bf16.mxu0 0
    %62 = vmatpush1.bf16.msra.mxu0 0
    %63 = vmatprep.subr.bf16.mxu0 0
    %64 = vmatpush1.bf16.msra.mxu0 %v46
    %65 = vmatprep.subr.bf16.mxu0 0
    %66 = vmatpush1.bf16.msra.mxu0 %v45
    %67 = vmatprep.subr.bf16.mxu0 0
    %68 = vmatpush2.bf16.msra.mxu0 0
    %69 = vmatprep.subr.bf16.mxu0 0
    %70 = vmatpush2.bf16.msra.mxu0 0
    %71 = vmatprep.subr.bf16.mxu0 0
    %72 = vmatpush2.bf16.msra.mxu0 0
    %73 = vmatprep.subr.bf16.mxu0 0
    %74 = vmatpush2.bf16.msra.mxu0 0
    %75 = vmatprep.subr.bf16.mxu0 0
    %76 = vmatpush2.bf16.msra.mxu0 0
    %77 = vmatprep.subr.bf16.mxu0 0
    %78 = vmatpush2.bf16.msra.mxu0 0
    %79 = vmatprep.subr.bf16.mxu0 0
    %80 = vmatpush2.bf16.msra.mxu0 0
    %81 = vmatprep.subr.bf16.mxu0 0
    %82 = vmatpush2.bf16.msra.mxu0 0
    %83 = vmatprep.mubr.bf16.mxu0 0
    %84 = vmatmul.mubr.bf16.gmra.mxu0 %v49
    %v85 = vpop.f32.mrf.mxu0
    %v86 = vadd.f32 0.0, %v85
    %v87 = vpop.f32.mrf.mxu0
    %v88 = vpop.f32.mrf.mxu0
    %v89 = vadd.f32 0.0, %v88
    %v90 = vpop.f32.mrf.mxu0
    %91 = vdwg.mxu0
    %v92 = vadd.f32 %v36, %v86
    %v93 = vadd.f32 %v37, %v89
    %vm94 = vcmask 785408
    %95 = vst.msk [vmem:[#allocation2] sm:$0xff] %vm94, %v92
    %96 = vst.msk [vmem:[#allocation2 + $0x8] sm:$0xff] %vm94, %v93
    // Predicated region
    $region22: #{encoder_forward.8} parent=1 // pred_check
      %p97 = pneg %p29
    $region23: #{encoder_forward.8} parent=1 // pred_check_branch
      %99 = sbr.rel (%p97) target = $region25
    $region24: #{encoder_forward.8} parent=1 // pred_region
      %v100 = vld [vmem:[#allocation2] sm:$0xff]
      %v101 = vld [vmem:[#allocation2 + $0x8] sm:$0xff]
      %v102 = vld [vmem:[%s2] sm:$0x1]
      %v104 = vlaneseq
      %v105 = vshrl.u32 %v104, 7
      %v106 = vsub.s32 0, %v105
      %v107 = vrot.slane %v102, %v106
      %v109 = vadd.f32 %v100, %v107
      %v110 = vadd.f32 %v101, %v107
      %111 = vst.msk [vmem:[%s3] sm:$0xff] %vm94, %v109
      %112 = vst.msk [vmem:[%s3 + $0x8] sm:$0xff] %vm94, %v110
    $region25: #{encoder_forward.8} parent=1 // pred_fallthru
      _
    // Predicated region
    $region26: #{encoder_forward.8} parent=1 // pred_check
      _
    $region27: #{encoder_forward.8} parent=1 // pred_check_branch
      %114 = sbr.rel (0) target = $region29
    $region28: #{encoder_forward.8} parent=1 // pred_region
      _
    $region29: #{encoder_forward.8} parent=1 // pred_fallthru
      _
    // Predicated region
    $region30: #{encoder_forward.8} parent=1 // pred_check
      _
    $region31: #{encoder_forward.8} parent=1 // pred_check_branch
      %116 = sbr.rel (0) target = $region33
    $region32: #{encoder_forward.8} parent=1 // pred_region
      _
    $region33: #{encoder_forward.8} parent=1 // pred_fallthru
      _
    %117 = vsyncpa [#allocation4], 1

// kernel: encoder_forward.9
$region0: #{encoder_forward.9}
  #allocation0 [shape = 'u32[]', space=smem, size = 0x4, offset = 0x4, fixed_abs, tag = 'smem constant byte address 0x4 - core index']
  #allocation1 [shape = 'u32[144,128]{1,0:T(1,128)}', space=vmem, size = 0x12000, scoped, tag = 'internal scratch']
  #allocation2 [shape = 'f32[8,1]{1,0:T(8,128)}', space=vmem, size = 0x1000, scoped, tag = 'scratch operand']
  #allocation3 [shape = 'f32[8,1]{1,0:T(8,128)}', space=vmem, size = 0x1000, scoped, tag = 'scratch operand']
  #allocation4 [shape = 'f32[8,8]{1,0:T(8,128)}', space=vmem, size = 0x1000, scoped, tag = 'scratch operand']
  %s0 = inlined_call_operand.vmem [shape: f32[2,4,8,8], index: 0, kind: input, shape index: {}]
  %s1 = inlined_call_operand.vmem [shape: f32[2,4,8,8], index: 1, kind: input, shape index: {}]
  %s2 = inlined_call_operand.vmem [shape: f32[2,4,8,8], index: 2, kind: input, shape index: {}]
  %s3 = inlined_call_operand.vmem [shape: f32[2,4,8,8], index: 3, kind: output, shape index: {}]
  %s4 = sld [smem:[#allocation0]]
  $region53: #{encoder_forward.9} parent=0
    _
  %s6 = ssub.s32 1, %s4
  %s7 = scalar_select 0, %s6, %s4
  loop: start=0, step=1, limit=10
  $region2: #{encoder_forward.9} parent=0 // loop_pre_header
    _
  $region3: #{encoder_forward.9} parent=0 // loop_header
    %s9 = sphi 0, %s13
    %p10 = scmp.ge.s32.totalorder %s9, 10
    %s16 = sphi 0, %s42
    %s17 = sphi 0, %s38
    %s18 = sphi 0, %s34
    %s19 = sphi 0, %s30
    %s20 = sphi 0, %s16
    %s21 = sphi 0, %s17
    %s22 = sphi 0, %s18
    %s23 = sphi 0, %s19
    %s24 = sphi 0, %s20
    %s25 = sphi 0, %s21
    %s26 = sphi 0, %s22
    %s27 = sphi 0, %s23
    %s49 = sphi 0, %s51
    %s52 = sphi 0, %s49
    %s53 = sphi 0, %s52
    %s69 = sphi 0, %s53
    %s79 = sphi 0, %s81
    %s82 = sphi 0, %s79
    %s83 = sphi 0, %s82
    %s99 = sphi 0, %s83
    %s109 = sphi 0, %s111
    %s112 = sphi 0, %s109
    %s113 = sphi 0, %s112
    %s129 = sphi 0, %s113
    %s139 = sphi 0, %s141
    %s142 = sphi 0, %s139
    %s143 = sphi 0, %s142
    %s159 = sphi 0, %s143
  $region4: #{encoder_forward.9} parent=0 // loop_header_branch
    %12 = sbr.rel (%p10) target = $region8
  $region5: #{encoder_forward.9} parent=0 // loop_body
    %s14 = ssub.s32 %s9, 1
    %s15 = ssub.s32 %s9, 2
    %s28 = sadd.s32 1, %s19
    %p29 = scmp.ge.s32.totalorder %s28, 1
    %s30 = scalar_select %p29, 0, %s28
    %s31 = sadd.s32 1, %s18
    %s32 = scalar_select %p29, %s31, %s18
    %p33 = scmp.ge.s32.totalorder %s32, 1
    %s34 = scalar_select %p33, 0, %s32
    %s35 = sadd.s32 1, %s17
    %s36 = scalar_select %p33, %s35, %s17
    %p37 = scmp.ge.s32.totalorder %s36, 4
    %s38 = scalar_select %p37, 0, %s36
    %s39 = sadd.s32 1, %s16
    %s40 = scalar_select %p37, %s39, %s16
    %p41 = scmp.ge.s32.totalorder %s40, 2
    %s42 = scalar_select %p41, 0, %s40
    %s43 = ssub.s32 %s16, %s42
    %s44 = ssub.s32 %s17, %s38
    %s45 = sor.u32 %s43, %s44
    %s46 = ssub.s32 %s18, %s34
    %s47 = sor.u32 %s45, %s46
    %p48 = scmp.eq.s32.totalorder %s47, 0
    %s50 = sadd.s32 %s49, 1
    %s51 = scalar_select %p48, %s49, %s50
    %p54 = pneg %p48
    %p55 = scmp.eq.s32.totalorder %s9, 7
    %p56 = por %p54, %p55
    %p57 = scmp.ne.s32.totalorder %s49, %s52
    %p58 = scmp.eq.s32.totalorder %s9, 0
    %p59 = por %p57, %p58
    %p60 = scmp.ne.s32.totalorder %s49, %s52
    %p61 = scmp.eq.s32.totalorder %s14, 7
    %p62 = por %p60, %p61
    %p63 = scmp.ne.s32.totalorder %s52, %s53
    %p64 = scmp.eq.s32.totalorder %s14, 0
    %p65 = por %p63, %p64
    %p66 = scmp.ne.s32.totalorder %s52, %s53
    %p67 = scmp.eq.s32.totalorder %s15, 7
    %p68 = por %p66, %p67
    %p70 = scmp.ne.s32.totalorder %s53, %s69
    %p71 = scmp.eq.s32.totalorder %s15, 0
    %p72 = por %p70, %p71
    %s73 = ssub.s32 %s16, %s42
    %s74 = ssub.s32 %s17, %s38
    %s75 = sor.u32 %s73, %s74
    %s76 = ssub.s32 %s19, %s30
    %s77 = sor.u32 %s75, %s76
    %p78 = scmp.eq.s32.totalorder %s77, 0
    %s80 = sadd.s32 %s79, 1
    %s81 = scalar_select %p78, %s79, %s80
    %p84 = pneg %p78
    %p85 = scmp.eq.s32.totalorder %s9, 7
    %p86 = por %p84, %p85
    %p87 = scmp.ne.s32.totalorder %s79, %s82
    %p88 = scmp.eq.s32.totalorder %s9, 0
    %p89 = por %p87, %p88
    %p90 = scmp.ne.s32.totalorder %s79, %s82
    %p91 = scmp.eq.s32.totalorder %s14, 7
    %p92 = por %p90, %p91
    %p93 = scmp.ne.s32.totalorder %s82, %s83
    %p94 = scmp.eq.s32.totalorder %s14, 0
    %p95 = por %p93, %p94
    %p96 = scmp.ne.s32.totalorder %s82, %s83
    %p97 = scmp.eq.s32.totalorder %s15, 7
    %p98 = por %p96, %p97
    %p100 = scmp.ne.s32.totalorder %s83, %s99
    %p101 = scmp.eq.s32.totalorder %s15, 0
    %p102 = por %p100, %p101
    %s103 = ssub.s32 %s16, %s42
    %s104 = ssub.s32 %s17, %s38
    %s105 = sor.u32 %s103, %s104
    %s106 = ssub.s32 %s19, %s30
    %s107 = sor.u32 %s105, %s106
    %p108 = scmp.eq.s32.totalorder %s107, 0
    %s110 = sadd.s32 %s109, 1
    %s111 = scalar_select %p108, %s109, %s110
    %p114 = pneg %p108
    %p115 = scmp.eq.s32.totalorder %s9, 7
    %p116 = por %p114, %p115
    %p117 = scmp.ne.s32.totalorder %s109, %s112
    %p118 = scmp.eq.s32.totalorder %s9, 0
    %p119 = por %p117, %p118
    %p120 = scmp.ne.s32.totalorder %s109, %s112
    %p121 = scmp.eq.s32.totalorder %s14, 7
    %p122 = por %p120, %p121
    %p123 = scmp.ne.s32.totalorder %s112, %s113
    %p124 = scmp.eq.s32.totalorder %s14, 0
    %p125 = por %p123, %p124
    %p126 = scmp.ne.s32.totalorder %s112, %s113
    %p127 = scmp.eq.s32.totalorder %s15, 7
    %p128 = por %p126, %p127
    %p130 = scmp.ne.s32.totalorder %s113, %s129
    %p131 = scmp.eq.s32.totalorder %s15, 0
    %p132 = por %p130, %p131
    %s133 = ssub.s32 %s16, %s42
    %s134 = ssub.s32 %s17, %s38
    %s135 = sor.u32 %s133, %s134
    %s136 = ssub.s32 %s18, %s34
    %s137 = sor.u32 %s135, %s136
    %p138 = scmp.eq.s32.totalorder %s137, 0
    %s140 = sadd.s32 %s139, 1
    %s141 = scalar_select %p138, %s139, %s140
    %p144 = pneg %p138
    %p145 = scmp.eq.s32.totalorder %s9, 7
    %p146 = por %p144, %p145
    %p147 = scmp.ne.s32.totalorder %s139, %s142
    %p148 = scmp.eq.s32.totalorder %s9, 0
    %p149 = por %p147, %p148
    %p150 = scmp.ne.s32.totalorder %s139, %s142
    %p151 = scmp.eq.s32.totalorder %s14, 7
    %p152 = por %p150, %p151
    %p153 = scmp.ne.s32.totalorder %s142, %s143
    %p154 = scmp.eq.s32.totalorder %s14, 0
    %p155 = por %p153, %p154
    %p156 = scmp.ne.s32.totalorder %s142, %s143
    %p157 = scmp.eq.s32.totalorder %s15, 7
    %p158 = por %p156, %p157
    %p160 = scmp.ne.s32.totalorder %s143, %s159
    %p161 = scmp.eq.s32.totalorder %s15, 0
    %p162 = por %p160, %p161
    %p163 = scmp.le.s32.totalorder 1, %s9
    %p164 = scmp.lt.s32.totalorder %s9, 9
    %p165 = pnand %p163, %p164
    %p166 = pneg %p165
    // Predicated region
    $region9: #{encoder_forward.9} parent=5 // pred_check
      _
    $region10: #{encoder_forward.9} parent=5 // pred_check_branch
      %168 = sbr.rel (%p165) target = $region12
    $region11: #{encoder_forward.9} parent=5 // pred_region
      %s169 = ssub.s32 %s9, 1
    $region12: #{encoder_forward.9} parent=5 // pred_fallthru
      _
    %p170 = scmp.lt.s32.totalorder %s9, 8
    // Predicated region
    $region13: #{encoder_forward.9} parent=5 // pred_check
      %p171 = pneg %p170
    $region14: #{encoder_forward.9} parent=5 // pred_check_branch
      %173 = sbr.rel (%p171) target = $region16
    $region15: #{encoder_forward.9} parent=5 // pred_region
      // Predicated region
      $region17: #{encoder_forward.9} parent=15 // pred_check
        %p174 = pneg %p59
      $region18: #{encoder_forward.9} parent=15 // pred_check_branch
        %176 = sbr.rel (%p174) target = $region20
      $region19: #{encoder_forward.9} parent=15 // pred_region
        %p177 = scmp.lt.s32.totalorder %s16, 1
        %s178 = scalar_select %p177, %s16, 1
        %p179 = scmp.lt.s32.totalorder %s17, 3
        %s180 = scalar_select %p179, %s17, 3
        %p181 = scmp.lt.s32.totalorder %s18, 0
        %s182 = scalar_select %p181, %s18, 0
        %s183 = sadd.s32 %s182, %s180
        %s184 = smul.addr %s178, 4
        %s185 = sadd.s32 %s183, %s184
        %s186 = smul.addr %s185, 8
        %s187 = scalar_lea.vmem %s0, %s186
      $region20: #{encoder_forward.9} parent=15 // pred_fallthru
        _
      // Predicated region
      $region21: #{encoder_forward.9} parent=15 // pred_check
        %p188 = pneg %p89
      $region22: #{encoder_forward.9} parent=15 // pred_check_branch
        %190 = sbr.rel (%p188) target = $region24
      $region23: #{encoder_forward.9} parent=15 // pred_region
        %p191 = scmp.lt.s32.totalorder %s16, 1
        %s192 = scalar_select %p191, %s16, 1
        %p193 = scmp.lt.s32.totalorder %s17, 3
        %s194 = scalar_select %p193, %s17, 3
        %p195 = scmp.lt.s32.totalorder %s19, 0
        %s196 = scalar_select %p195, %s19, 0
        %s197 = sadd.s32 %s196, %s194
        %s198 = smul.addr %s192, 4
        %s199 = sadd.s32 %s197, %s198
        %s200 = smul.addr %s199, 8
        %s201 = scalar_lea.vmem %s1, %s200
      $region24: #{encoder_forward.9} parent=15 // pred_fallthru
        _
      // Predicated region
      $region25: #{encoder_forward.9} parent=15 // pred_check
        %p202 = pneg %p119
      $region26: #{encoder_forward.9} parent=15 // pred_check_branch
        %204 = sbr.rel (%p202) target = $region28
      $region27: #{encoder_forward.9} parent=15 // pred_region
        %p205 = scmp.lt.s32.totalorder %s16, 1
        %s206 = scalar_select %p205, %s16, 1
        %p207 = scmp.lt.s32.totalorder %s17, 3
        %s208 = scalar_select %p207, %s17, 3
        %p209 = scmp.lt.s32.totalorder %s19, 0
        %s210 = scalar_select %p209, %s19, 0
        %s211 = sadd.s32 %s210, %s208
        %s212 = smul.addr %s206, 4
        %s213 = sadd.s32 %s211, %s212
        %s214 = smul.addr %s213, 8
        %s215 = scalar_lea.vmem %s2, %s214
      $region28: #{encoder_forward.9} parent=15 // pred_fallthru
        _
    $region16: #{encoder_forward.9} parent=5 // pred_fallthru
      _
    %p216 = scmp.le.s32.totalorder 1, %s9
    %p217 = scmp.lt.s32.totalorder %s9, 9
    %p218 = pnand %p216, %p217
    %p219 = pneg %p218
    // Predicated region
    $region29: #{encoder_forward.9} parent=5 // pred_check
      _
    $region30: #{encoder_forward.9} parent=5 // pred_check_branch
      %221 = sbr.rel (%p218) target = $region32
    $region31: #{encoder_forward.9} parent=5 // pred_region
      %s222 = ssub.s32 %s9, 1
      %p223 = scmp.lt.s32.totalorder %s20, 1
      %s224 = scalar_select %p223, %s20, 1
      %p225 = scmp.lt.s32.totalorder %s21, 3
      %s226 = scalar_select %p225, %s21, 3
      %p227 = scmp.lt.s32.totalorder %s22, 0
      %s228 = scalar_select %p227, %s22, 0
      %s229 = sadd.s32 %s228, %s226
      %s230 = smul.addr %s224, 4
      %s231 = sadd.s32 %s229, %s230
      %s232 = smul.addr %s231, 8
      %s233 = scalar_lea.vmem %s0, %s232
      %p234 = pneg %p65
      %p235 = pneg %p62
      %p236 = scmp.lt.s32.totalorder %s20, 1
      %s237 = scalar_select %p236, %s20, 1
      %p238 = scmp.lt.s32.totalorder %s21, 3
      %s239 = scalar_select %p238, %s21, 3
      %p240 = scmp.lt.s32.totalorder %s23, 0
      %s241 = scalar_select %p240, %s23, 0
      %s242 = sadd.s32 %s241, %s239
      %s243 = smul.addr %s237, 4
      %s244 = sadd.s32 %s242, %s243
      %s245 = smul.addr %s244, 8
      %s246 = scalar_lea.vmem %s1, %s245
      %p247 = pneg %p95
      %p248 = pneg %p92
      %p249 = scmp.lt.s32.totalorder %s20, 1
      %s250 = scalar_select %p249, %s20, 1
      %p251 = scmp.lt.s32.totalorder %s21, 3
      %s252 = scalar_select %p251, %s21, 3
      %p253 = scmp.lt.s32.totalorder %s23, 0
      %s254 = scalar_select %p253, %s23, 0
      %s255 = sadd.s32 %s254, %s252
      %s256 = smul.addr %s250, 4
      %s257 = sadd.s32 %s255, %s256
      %s258 = smul.addr %s257, 8
      %s259 = scalar_lea.vmem %s2, %s258
      %p260 = pneg %p125
      %p261 = pneg %p122
      %p262 = pneg %p155
      %p263 = pneg %p152
      %p264 = scmp.lt.s32.totalorder %s20, 1
      %s265 = scalar_select %p264, %s20, 1
      %p266 = scmp.lt.s32.totalorder %s21, 3
      %s267 = scalar_select %p266, %s21, 3
      %p268 = scmp.lt.s32.totalorder %s22, 0
      %s269 = scalar_select %p268, %s22, 0
      %s270 = sadd.s32 %s269, %s267
      %s271 = smul.addr %s265, 4
      %s272 = sadd.s32 %s270, %s271
      %s273 = smul.addr %s272, 8
      %s274 = scalar_lea.vmem %s3, %s273
      %p275 = scmp.lt.s32.totalorder %s20, 1
      %s276 = scalar_select %p275, %s20, 1
      %p277 = scmp.lt.s32.totalorder %s21, 3
      %s278 = scalar_select %p277, %s21, 3
      %p279 = scmp.lt.s32.totalorder %s22, 0
      %s280 = scalar_select %p279, %s22, 0
      %s281 = sadd.s32 %s280, %s278
      %s282 = smul.addr %s276, 4
      %s283 = sadd.s32 %s281, %s282
      %s284 = smul.addr %s283, 8
      %s285 = scalar_lea.vmem %s0, %s284
      %p286 = scmp.lt.s32.totalorder %s20, 1
      %s287 = scalar_select %p286, %s20, 1
      %p288 = scmp.lt.s32.totalorder %s21, 3
      %s289 = scalar_select %p288, %s21, 3
      %p290 = scmp.lt.s32.totalorder %s23, 0
      %s291 = scalar_select %p290, %s23, 0
      %s292 = sadd.s32 %s291, %s289
      %s293 = smul.addr %s287, 4
      %s294 = sadd.s32 %s292, %s293
      %s295 = smul.addr %s294, 8
      %s296 = scalar_lea.vmem %s1, %s295
      %p297 = scmp.lt.s32.totalorder %s20, 1
      %s298 = scalar_select %p297, %s20, 1
      %p299 = scmp.lt.s32.totalorder %s21, 3
      %s300 = scalar_select %p299, %s21, 3
      %p301 = scmp.lt.s32.totalorder %s23, 0
      %s302 = scalar_select %p301, %s23, 0
      %s303 = sadd.s32 %s302, %s300
      %s304 = smul.addr %s298, 4
      %s305 = sadd.s32 %s303, %s304
      %s306 = smul.addr %s305, 8
      %s307 = scalar_lea.vmem %s2, %s306
      %p308 = scmp.lt.s32.totalorder %s20, 1
      %s309 = scalar_select %p308, %s20, 1
      %p310 = scmp.lt.s32.totalorder %s21, 3
      %s311 = scalar_select %p310, %s21, 3
      %p312 = scmp.lt.s32.totalorder %s22, 0
      %s313 = scalar_select %p312, %s22, 0
      %s314 = sadd.s32 %s313, %s311
      %s315 = smul.addr %s309, 4
      %s316 = sadd.s32 %s314, %s315
      %s317 = smul.addr %s316, 8
      %s318 = scalar_lea.vmem %s3, %s317
      %p320 = scmp.eq.s32.totalorder %s23, 0
      // Predicated region
      $region33: #{encoder_forward.9} parent=31 // pred_check
        %p321 = pneg %p320
      $region34: #{encoder_forward.9} parent=31 // pred_check_branch
        %323 = sbr.rel (%p321) target = $region36
      $region35: #{encoder_forward.9} parent=31 // pred_region
        %vm324 = vcmask 7168
        %325 = vst.msk [vmem:[#allocation2] sm:$0xff] %vm324, -inf
        %326 = vst.msk [vmem:[#allocation3] sm:$0xff] %vm324, 0.0
        %vm327 = vcmask 64512
        %328 = vst.msk [vmem:[#allocation4] sm:$0xff] %vm327, 0.0
      $region36: #{encoder_forward.9} parent=31 // pred_fallthru
        _
      %v329 = vld [vmem:[%s285] sm:$0xff]
      %v330 = vpack.c.bf16 %v329, %v329
      %v331 = vld [vmem:[%s296] sm:$0xff]
      %v332 = vpack.c.bf16 %v331, %v331
      %v333 = vld [vmem:[%s307] sm:$0xff]
      %v334 = vpack.c.bf16 %v333, %v333
      %vm335 = vcmask 64512
      %v337 = vsel %vm335, %v330, 0
      %v340 = vsel %vm335, %v332, 0
      %342 = vmatprep.subr.bf16.mxu0 0
      %343 = vmatpush1.bf16.xpose.msra.mxu0 0
      %344 = vmatprep.subr.bf16.mxu0 0
      %345 = vmatpush1.bf16.xpose.msra.mxu0 0
      %346 = vmatprep.subr.bf16.mxu0 0
      %347 = vmatpush1.bf16.xpose.msra.mxu0 0
      %348 = vmatprep.subr.bf16.mxu0 0
      %349 = vmatpush1.bf16.xpose.msra.mxu0 0
      %350 = vmatprep.subr.bf16.mxu0 0
      %351 = vmatpush1.bf16.xpose.msra.mxu0 0
      %352 = vmatprep.subr.bf16.mxu0 0
      %353 = vmatpush1.bf16.xpose.msra.mxu0 0
      %354 = vmatprep.subr.bf16.mxu0 0
      %355 = vmatpush1.bf16.xpose.msra.mxu0 0
      %356 = vmatprep.subr.bf16.mxu0 0
      %357 = vmatpush1.bf16.xpose.msra.mxu0 %v340
      %358 = vmatprep.subr.bf16.mxu0 0
      %359 = vmatpush2.bf16.xpose.msra.mxu0 0
      %360 = vmatprep.subr.bf16.mxu0 0
      %361 = vmatpush2.bf16.xpose.msra.mxu0 0
      %362 = vmatprep.subr.bf16.mxu0 0
      %363 = vmatpush2.bf16.xpose.msra.mxu0 0
      %364 = vmatprep.subr.bf16.mxu0 0
      %365 = vmatpush2.bf16.xpose.msra.mxu0 0
      %366 = vmatprep.subr.bf16.mxu0 0
      %367 = vmatpush2.bf16.xpose.msra.mxu0 0
      %368 = vmatprep.subr.bf16.mxu0 0
      %369 = vmatpush2.bf16.xpose.msra.mxu0 0
      %370 = vmatprep.subr.bf16.mxu0 0
      %371 = vmatpush2.bf16.xpose.msra.mxu0 0
      %372 = vmatprep.subr.bf16.mxu0 0
      %373 = vmatpush2.bf16.xpose.msra.mxu0 0
      %374 = vmatprep.mubr.bf16.mxu0 0
      %375 = vmatmul.mubr.bf16.gmra.mxu0 %v337
      %v376 = vpop.f32.mrf.mxu0
      %v377 = vadd.f32 0.0, %v376
      %v378 = vpop.f32.mrf.mxu0
      %v379 = vpop.f32.mrf.mxu0
      %v380 = vpop.f32.mrf.mxu0
      %381 = vdwg.mxu0
      %v382 = vld [vmem:[#allocation2] sm:$0xff]
      %v383 = vsel %vm335, %v377, -inf
      %384 = vmax.xlane.f32.xlu0 %v383
      %v385 = vpop.xlane.xlu0 %384
      %v386 = vmax.f32 %v382, %v385
      %v387 = vsub.f32 %v382, %v386
      %v388 = vmul.f32 %v387, 1.442695
      %v389 = vpow.pop %v388
      %391 = vset.pattern.permute.xlu0 0
      %392 = vperm.xlu0 %391, %v386
      %v393 = vpop.permute.xlu0 %392
      %v395 = vsub.f32 %v377, %v393
      %v396 = vmul.f32 %v395, 1.442695
      %v397 = vpow.pop %v396
      %v398 = vld [vmem:[#allocation3] sm:$0xff]
      %v399 = vmul.f32 %v389, %v398
      %v400 = vsel %vm335, %v397, 0.0
      %401 = vadd.xlane.f32.xlu0 %v400
      %v402 = vpop.xlane.xlu0 %401
      %v403 = vadd.f32 %v399, %v402
      %vm404 = vcmask 7168
      %405 = vst.msk [vmem:[#allocation3] sm:$0xff] %vm404, %v403
      %v406 = vld [vmem:[#allocation4] sm:$0xff]
      %408 = vset.pattern.permute.xlu0 0
      %409 = vperm.xlu0 %408, %v389
      %v410 = vpop.permute.xlu0 %409
      %v412 = vmul.f32 %v410, %v406
      %v413 = vpack.c.bf16 %v397, %v397
      %v415 = vsel %vm335, %v413, 0
      %vm417 = vcmask 1043456
      %v419 = vsel %vm417, %v334, 0
      %421 = vmatprep.subr.bf16.mxu0 0
      %422 = vmatpush1.bf16.msra.mxu0 0
      %423 = vmatprep.subr.bf16.mxu0 0
      %424 = vmatpush1.bf16.msra.mxu0 0
      %425 = vmatprep.subr.bf16.mxu0 0
      %426 = vmatpush1.bf16.msra.mxu0 0
      %427 = vmatprep.subr.bf16.mxu0 0
      %428 = vmatpush1.bf16.msra.mxu0 0
      %429 = vmatprep.subr.bf16.mxu0 0
      %430 = vmatpush1.bf16.msra.mxu0 0
      %431 = vmatprep.subr.bf16.mxu0 0
      %432 = vmatpush1.bf16.msra.mxu0 0
      %433 = vmatprep.subr.bf16.mxu0 0
      %434 = vmatpush1.bf16.msra.mxu0 0
      %435 = vmatprep.subr.bf16.mxu0 0
      %436 = vmatpush1.bf16.msra.mxu0 %v419
      %437 = vmatprep.subr.bf16.mxu0 0
      %438 = vmatpush2.bf16.msra.mxu0 0
      %439 = vmatprep.subr.bf16.mxu0 0
      %440 = vmatpush2.bf16.msra.mxu0 0
      %441 = vmatprep.subr.bf16.mxu0 0
      %442 = vmatpush2.bf16.msra.mxu0 0
      %443 = vmatprep.subr.bf16.mxu0 0
      %444 = vmatpush2.bf16.msra.mxu0 0
      %445 = vmatprep.subr.bf16.mxu0 0
      %446 = vmatpush2.bf16.msra.mxu0 0
      %447 = vmatprep.subr.bf16.mxu0 0
      %448 = vmatpush2.bf16.msra.mxu0 0
      %449 = vmatprep.subr.bf16.mxu0 0
      %450 = vmatpush2.bf16.msra.mxu0 0
      %451 = vmatprep.subr.bf16.mxu0 0
      %452 = vmatpush2.bf16.msra.mxu0 0
      %453 = vmatprep.mubr.bf16.mxu0 0
      %454 = vmatmul.mubr.bf16.gmra.mxu0 %v415
      %v455 = vpop.f32.mrf.mxu0
      %v456 = vadd.f32 0.0, %v455
      %v457 = vpop.f32.mrf.mxu0
      %v458 = vpop.f32.mrf.mxu0
      %v459 = vpop.f32.mrf.mxu0
      %460 = vdwg.mxu0
      %v461 = vadd.f32 %v412, %v456
      %462 = vst.msk [vmem:[#allocation4] sm:$0xff] %vm335, %v461
      %463 = vst.msk [vmem:[#allocation2] sm:$0xff] %vm404, %v386
      // Predicated region
      $region37: #{encoder_forward.9} parent=31 // pred_check
        %p464 = pneg %p320
      $region38: #{encoder_forward.9} parent=31 // pred_check_branch
        %466 = sbr.rel (%p464) target = $region40
      $region39: #{encoder_forward.9} parent=31 // pred_region
        %v467 = vld [vmem:[#allocation4] sm:$0xff]
        %v468 = vld [vmem:[#allocation3] sm:$0xff]
        %470 = vset.pattern.permute.xlu0 0
        %471 = vperm.xlu0 %470, %v468
        %v472 = vpop.permute.xlu0 %471
        %v474 = vrcp.pop %v472
        %v475 = vmul.f32 %v467, %v474
        %476 = vst.msk [vmem:[%s318] sm:$0xff] %vm335, %v475
      $region40: #{encoder_forward.9} parent=31 // pred_fallthru
        _
      %p477 = scmp.lt.s32.totalorder %s20, 1
      %s478 = scalar_select %p477, %s20, 1
      %p479 = scmp.lt.s32.totalorder %s21, 3
      %s480 = scalar_select %p479, %s21, 3
      %p481 = scmp.lt.s32.totalorder %s22, 0
      %s482 = scalar_select %p481, %s22, 0
      %s483 = sadd.s32 %s482, %s480
      %s484 = smul.addr %s478, 4
      %s485 = sadd.s32 %s483, %s484
      %s486 = smul.addr %s485, 8
      %s487 = scalar_lea.vmem %s3, %s486
      // Predicated region
      $region41: #{encoder_forward.9} parent=31 // pred_check
        %p488 = pneg %p152
      $region42: #{encoder_forward.9} parent=31 // pred_check_branch
        %490 = sbr.rel (%p488) target = $region44
      $region43: #{encoder_forward.9} parent=31 // pred_region
        _
      $region44: #{encoder_forward.9} parent=31 // pred_fallthru
        _
    $region32: #{encoder_forward.9} parent=5 // pred_fallthru
      _
    %p491 = scmp.le.s32.totalorder 2, %s9
    // Predicated region
    $region45: #{encoder_forward.9} parent=5 // pred_check
      %p492 = pneg %p491
    $region46: #{encoder_forward.9} parent=5 // pred_check_branch
      %494 = sbr.rel (%p492) target = $region48
    $region47: #{encoder_forward.9} parent=5 // pred_region
      %s495 = ssub.s32 %s9, 2
      // Predicated region
      $region49: #{encoder_forward.9} parent=47 // pred_check
        %p496 = pneg %p158
      $region50: #{encoder_forward.9} parent=47 // pred_check_branch
        %498 = sbr.rel (%p496) target = $region52
      $region51: #{encoder_forward.9} parent=47 // pred_region
        %p499 = scmp.lt.s32.totalorder %s24, 1
        %s500 = scalar_select %p499, %s24, 1
        %p501 = scmp.lt.s32.totalorder %s25, 3
        %s502 = scalar_select %p501, %s25, 3
        %p503 = scmp.lt.s32.totalorder %s26, 0
        %s504 = scalar_select %p503, %s26, 0
        %s505 = sadd.s32 %s504, %s502
        %s506 = smul.addr %s500, 4
        %s507 = sadd.s32 %s505, %s506
        %s508 = smul.addr %s507, 8
        %s509 = scalar_lea.vmem %s3, %s508
      $region52: #{encoder_forward.9} parent=47 // pred_fallthru
        _
    $region48: #{encoder_forward.9} parent=5 // pred_fallthru
      _
  $region6: #{encoder_forward.9} parent=0 // loop_footer
    %s13 = sadd.s32 1, %s9
  $region7: #{encoder_forward.9} parent=0 // loop_footer_branch
    %8 = sbr.rel target = $region3
  $region8: #{encoder_forward.9} parent=0 // loop_exit
    _

// kernel: encoder_forward.10
$region0: #{encoder_forward.10}
  #allocation0 [shape = 'u32[]', space=smem, size = 0x4, offset = 0x4, fixed_abs, tag = 'smem constant byte address 0x4 - core index']
  #allocation1 [shape = 'u32[144,128]{1,0:T(1,128)}', space=vmem, size = 0x12000, scoped, tag = 'internal scratch']
  #allocation2 [shape = 'f32[16,32]{1,0:T(8,128)}', space=vmem, size = 0x2000, scoped, tag = 'scratch operand']
  %s0 = inlined_call_operand.vmem [shape: f32[16,32], index: 0, kind: input, shape index: {}]
  %s1 = inlined_call_operand.vmem [shape: f32[16,32], index: 1, kind: input, shape index: {}]
  %s2 = inlined_call_operand.vmem [shape: f32[32,32], index: 2, kind: input, shape index: {}]
  %s3 = inlined_call_operand.vmem [shape: f32[1,32], index: 3, kind: input, shape index: {}]
  %s4 = inlined_call_operand.vmem [shape: f32[1,32], index: 4, kind: input, shape index: {}]
  %s5 = inlined_call_operand.vmem [shape: f32[1,32], index: 5, kind: input, shape index: {}]
  %s6 = inlined_call_operand.vmem [shape: f32[16,32], index: 6, kind: output, shape index: {}]
  %s7 = sld [smem:[#allocation0]]
  $region42: #{encoder_forward.10} parent=0
    _
  %s9 = ssub.s32 1, %s7
  %s10 = scalar_select 0, %s9, %s7
  // Predicated region
  $region2: #{encoder_forward.10} parent=0 // pred_check
    _
  $region3: #{encoder_forward.10} parent=0 // pred_check_branch
    %12 = sbr.rel (0) target = $region5
  $region4: #{encoder_forward.10} parent=0 // pred_region
    _
  $region5: #{encoder_forward.10} parent=0 // pred_fallthru
    _
  // Predicated region
  $region6: #{encoder_forward.10} parent=0 // pred_check
    _
  $region7: #{encoder_forward.10} parent=0 // pred_check_branch
    %14 = sbr.rel (0) target = $region9
  $region8: #{encoder_forward.10} parent=0 // pred_region
    _
  $region9: #{encoder_forward.10} parent=0 // pred_fallthru
    _
  // Predicated region
  $region10: #{encoder_forward.10} parent=0 // pred_check
    _
  $region11: #{encoder_forward.10} parent=0 // pred_check_branch
    %16 = sbr.rel (0) target = $region13
  $region12: #{encoder_forward.10} parent=0 // pred_region
    _
  $region13: #{encoder_forward.10} parent=0 // pred_fallthru
    _
  // Predicated region
  $region14: #{encoder_forward.10} parent=0 // pred_check
    _
  $region15: #{encoder_forward.10} parent=0 // pred_check_branch
    %18 = sbr.rel (0) target = $region17
  $region16: #{encoder_forward.10} parent=0 // pred_region
    _
  $region17: #{encoder_forward.10} parent=0 // pred_fallthru
    _
  // Predicated region
  $region18: #{encoder_forward.10} parent=0 // pred_check
    _
  $region19: #{encoder_forward.10} parent=0 // pred_check_branch
    %20 = sbr.rel (0) target = $region21
  $region20: #{encoder_forward.10} parent=0 // pred_region
    _
  $region21: #{encoder_forward.10} parent=0 // pred_fallthru
    _
  // Predicated region
  $region22: #{encoder_forward.10} parent=0 // pred_check
    _
  $region23: #{encoder_forward.10} parent=0 // pred_check_branch
    %22 = sbr.rel (0) target = $region25
  $region24: #{encoder_forward.10} parent=0 // pred_region
    _
  $region25: #{encoder_forward.10} parent=0 // pred_fallthru
    _
  %p24 = scmp.eq.s32.totalorder 0, 0
  // Predicated region
  $region26: #{encoder_forward.10} parent=0 // pred_check
    %p25 = pneg %p24
  $region27: #{encoder_forward.10} parent=0 // pred_check_branch
    %27 = sbr.rel (%p25) target = $region29
  $region28: #{encoder_forward.10} parent=0 // pred_region
    %vm28 = vcmask 261120
    %29 = vst.msk [vmem:[#allocation2] sm:$0xff] %vm28, 0.0
    %30 = vst.msk [vmem:[#allocation2 + $0x8] sm:$0xff] %vm28, 0.0
  $region29: #{encoder_forward.10} parent=0 // pred_fallthru
    _
  %v31 = vld [vmem:[#allocation2] sm:$0xff]
  %v32 = vld [vmem:[#allocation2 + $0x8] sm:$0xff]
  %v33 = vld [vmem:[%s0] sm:$0xff]
  %v34 = vld [vmem:[%s0 + $0x8] sm:$0xff]
  %v35 = vpack.c.bf16 %v34, %v33
  %v36 = vld [vmem:[%s2] sm:$0xff]
  %v37 = vld [vmem:[%s2 + $0x8] sm:$0xff]
  %v38 = vld [vmem:[%s2 + $0x10] sm:$0xff]
  %v39 = vld [vmem:[%s2 + $0x18] sm:$0xff]
  %v40 = vpack.c.bf16 %v37, %v36
  %v41 = vpack.c.bf16 %v39, %v38
  %vm42 = vcmask 261120
  %v44 = vsel %vm42, %v35, 0
  %46 = vmatprep.subr.bf16.mxu0 0
  %47 = vmatpush1.bf16.msra.mxu0 0
  %48 = vmatprep.subr.bf16.mxu0 0
  %49 = vmatpush1.bf16.msra.mxu0 0
  %50 = vmatprep.subr.bf16.mxu0 0
  %51 = vmatpush1.bf16.msra.mxu0 0
  %52 = vmatprep.subr.bf16.mxu0 0
  %53 = vmatpush1.bf16.msra.mxu0 0
  %54 = vmatprep.subr.bf16.mxu0 0
  %55 = vmatpush1.bf16.msra.mxu0 0
  %56 = vmatprep.subr.bf16.mxu0 0
  %57 = vmatpush1.bf16.msra.mxu0 0
  %58 = vmatprep.subr.bf16.mxu0 0
  %59 = vmatpush1.bf16.msra.mxu0 %v41
  %60 = vmatprep.subr.bf16.mxu0 0
  %61 = vmatpush1.bf16.msra.mxu0 %v40
  %62 = vmatprep.subr.bf16.mxu0 0
  %63 = vmatpush2.bf16.msra.mxu0 0
  %64 = vmatprep.subr.bf16.mxu0 0
  %65 = vmatpush2.bf16.msra.mxu0 0
  %66 = vmatprep.subr.bf16.mxu0 0
  %67 = vmatpush2.bf16.msra.mxu0 0
  %68 = vmatprep.subr.bf16.mxu0 0
  %69 = vmatpush2.bf16.msra.mxu0 0
  %70 = vmatprep.subr.bf16.mxu0 0
  %71 = vmatpush2.bf16.msra.mxu0 0
  %72 = vmatprep.subr.bf16.mxu0 0
  %73 = vmatpush2.bf16.msra.mxu0 0
  %74 = vmatprep.subr.bf16.mxu0 0
  %75 = vmatpush2.bf16.msra.mxu0 0
  %76 = vmatprep.subr.bf16.mxu0 0
  %77 = vmatpush2.bf16.msra.mxu0 0
  %78 = vmatprep.mubr.bf16.mxu0 0
  %79 = vmatmul.mubr.bf16.gmra.mxu0 %v44
  %v80 = vpop.f32.mrf.mxu0
  %v81 = vadd.f32 0.0, %v80
  %v82 = vpop.f32.mrf.mxu0
  %v83 = vpop.f32.mrf.mxu0
  %v84 = vadd.f32 0.0, %v83
  %v85 = vpop.f32.mrf.mxu0
  %86 = vdwg.mxu0
  %v87 = vadd.f32 %v31, %v81
  %v88 = vadd.f32 %v32, %v84
  %89 = vst.msk [vmem:[#allocation2] sm:$0xff] %vm42, %v87
  %90 = vst.msk [vmem:[#allocation2 + $0x8] sm:$0xff] %vm42, %v88
  // Predicated region
  $region30: #{encoder_forward.10} parent=0 // pred_check
    %p91 = pneg %p24
  $region31: #{encoder_forward.10} parent=0 // pred_check_branch
    %93 = sbr.rel (%p91) target = $region33
  $region32: #{encoder_forward.10} parent=0 // pred_region
    %v94 = vld [vmem:[#allocation2] sm:$0xff]
    %v95 = vld [vmem:[#allocation2 + $0x8] sm:$0xff]
    %v96 = vld [vmem:[%s3] sm:$0x1]
    %v98 = vlaneseq
    %v99 = vshrl.u32 %v98, 7
    %v100 = vsub.s32 0, %v99
    %v101 = vrot.slane %v96, %v100
    %v103 = vadd.f32 %v94, %v101
    %v104 = vadd.f32 %v95, %v101
    %v105 = vld [vmem:[%s1] sm:$0xff]
    %v106 = vld [vmem:[%s1 + $0x8] sm:$0xff]
    %v107 = vadd.f32 %v103, %v105
    %v108 = vadd.f32 %v104, %v106
    %v109 = vsel %vm42, %v107, 0.0
    %110 = vadd.xlane.f32.xlu0 %v109
    %v111 = vpop.xlane.xlu0 %110
    %v112 = vsel %vm42, %v108, 0.0
    %113 = vadd.xlane.f32.xlu0 %v112
    %v114 = vpop.xlane.xlu0 %113
    %v115 = vrcp.pop 32.0
    %v116 = vmul.f32 %v111, %v115
    %v117 = vmul.f32 %v114, %v115
    %v118 = vsub.f32 %v107, %v116
    %v119 = vsub.f32 %v108, %v117
    %v120 = vmul.f32 %v118, %v118
    %v121 = vmul.f32 %v119, %v119
    %v122 = vsel %vm42, %v120, 0.0
    %123 = vadd.xlane.f32.xlu0 %v122
    %v124 = vpop.xlane.xlu0 %123
    %v125 = vsel %vm42, %v121, 0.0
    %126 = vadd.xlane.f32.xlu0 %v125
    %v127 = vpop.xlane.xlu0 %126
    %v128 = vmul.f32 %v124, %v115
    %v129 = vmul.f32 %v127, %v115
    %v130 = vadd.f32 %v128, 1e-05
    %v131 = vadd.f32 %v129, 1e-05
    %v132 = vrsqrt.pop %v130
    %v133 = vrsqrt.pop %v131
    %v134 = vmul.f32 %v118, %v132
    %v135 = vmul.f32 %v119, %v133
    %v136 = vld [vmem:[%s4] sm:$0x1]
    %v138 = vlaneseq
    %v139 = vshrl.u32 %v138, 7
    %v140 = vsub.s32 0, %v139
    %v141 = vrot.slane %v136, %v140
    %v143 = vmul.f32 %v134, %v141
    %v144 = vmul.f32 %v135, %v141
    %v145 = vld [vmem:[%s5] sm:$0x1]
    %v147 = vlaneseq
    %v148 = vshrl.u32 %v147, 7
    %v149 = vsub.s32 0, %v148
    %v150 = vrot.slane %v145, %v149
    %v152 = vadd.f32 %v143, %v150
    %v153 = vadd.f32 %v144, %v150
    %154 = vst.msk [vmem:[%s6] sm:$0xff] %vm42, %v152
    %155 = vst.msk [vmem:[%s6 + $0x8] sm:$0xff] %vm42, %v153
  $region33: #{encoder_forward.10} parent=0 // pred_fallthru
    _
  // Predicated region
  $region34: #{encoder_forward.10} parent=0 // pred_check
    _
  $region35: #{encoder_forward.10} parent=0 // pred_check_branch
    %157 = sbr.rel (0) target = $region37
  $region36: #{encoder_forward.10} parent=0 // pred_region
    _
  $region37: #{encoder_forward.10} parent=0 // pred_fallthru
    _
  // Predicated region
  $region38: #{encoder_forward.10} parent=0 // pred_check
    _
  $region39: #{encoder_forward.10} parent=0 // pred_check_branch
    %159 = sbr.rel (0) target = $region41
  $region40: #{encoder_forward.10} parent=0 // pred_region
    _
  $region41: #{encoder_forward.10} parent=0 // pred_fallthru
    _

// kernel: encoder_forward.12
$region0: #{encoder_forward.12}
  #allocation0 [shape = 'u32[]', space=smem, size = 0x4, offset = 0x4, fixed_abs, tag = 'smem constant byte address 0x4 - core index']
  #allocation1 [shape = 'u32[144,128]{1,0:T(1,128)}', space=vmem, size = 0x12000, scoped, tag = 'internal scratch']
  #allocation2 [shape = 'f32[16,96]{1,0:T(8,128)}', space=vmem, size = 0x2000, scoped, tag = 'scratch operand']
  %s0 = inlined_call_operand.vmem [shape: f32[16,32], index: 0, kind: input, shape index: {}]
  %s1 = inlined_call_operand.vmem [shape: f32[32,96], index: 1, kind: input, shape index: {}]
  %s2 = inlined_call_operand.vmem [shape: f32[1,96], index: 2, kind: input, shape index: {}]
  %s3 = inlined_call_operand.vmem [shape: f32[16,96], index: 3, kind: output, shape index: {}]
  %s4 = sld [smem:[#allocation0]]
  $region30: #{encoder_forward.12} parent=0
    _
  %s6 = ssub.s32 1, %s4
  %s7 = scalar_select 0, %s6, %s4
  // Predicated region
  $region2: #{encoder_forward.12} parent=0 // pred_check
    _
  $region3: #{encoder_forward.12} parent=0 // pred_check_branch
    %9 = sbr.rel (0) target = $region5
  $region4: #{encoder_forward.12} parent=0 // pred_region
    _
  $region5: #{encoder_forward.12} parent=0 // pred_fallthru
    _
  // Predicated region
  $region6: #{encoder_forward.12} parent=0 // pred_check
    _
  $region7: #{encoder_forward.12} parent=0 // pred_check_branch
    %11 = sbr.rel (0) target = $region9
  $region8: #{encoder_forward.12} parent=0 // pred_region
    _
  $region9: #{encoder_forward.12} parent=0 // pred_fallthru
    _
  // Predicated region
  $region10: #{encoder_forward.12} parent=0 // pred_check
    _
  $region11: #{encoder_forward.12} parent=0 // pred_check_branch
    %13 = sbr.rel (0) target = $region13
  $region12: #{encoder_forward.12} parent=0 // pred_region
    _
  $region13: #{encoder_forward.12} parent=0 // pred_fallthru
    _
  %p15 = scmp.eq.s32.totalorder 0, 0
  // Predicated region
  $region14: #{encoder_forward.12} parent=0 // pred_check
    %p16 = pneg %p15
  $region15: #{encoder_forward.12} parent=0 // pred_check_branch
    %18 = sbr.rel (%p16) target = $region17
  $region16: #{encoder_forward.12} parent=0 // pred_region
    %vm19 = vcmask 785408
    %20 = vst.msk [vmem:[#allocation2] sm:$0xff] %vm19, 0.0
    %21 = vst.msk [vmem:[#allocation2 + $0x8] sm:$0xff] %vm19, 0.0
  $region17: #{encoder_forward.12} parent=0 // pred_fallthru
    _
  %v22 = vld [vmem:[#allocation2] sm:$0xff]
  %v23 = vld [vmem:[#allocation2 + $0x8] sm:$0xff]
  %v24 = vld [vmem:[%s0] sm:$0xff]
  %v25 = vld [vmem:[%s0 + $0x8] sm:$0xff]
  %v26 = vpack.c.bf16 %v25, %v24
  %v27 = vld [vmem:[%s1] sm:$0xff]
  %v28 = vld [vmem:[%s1 + $0x8] sm:$0xff]
  %v29 = vld [vmem:[%s1 + $0x10] sm:$0xff]
  %v30 = vld [vmem:[%s1 + $0x18] sm:$0xff]
  %v31 = vpack.c.bf16 %v28, %v27
  %v32 = vpack.c.bf16 %v30, %v29
  %vm33 = vcmask 261120
  %v35 = vsel %vm33, %v26, 0
  %37 = vmatprep.subr.bf16.mxu0 0
  %38 = vmatpush1.bf16.msra.mxu0 0
  %39 = vmatprep.subr.bf16.mxu0 0
  %40 = vmatpush1.bf16.msra.mxu0 0
  %41 = vmatprep.subr.bf16.mxu0 0
  %42 = vmatpush1.bf16.msra.mxu0 0
  %43 = vmatprep.subr.bf16.mxu0 0
  %44 = vmatpush1.bf16.msra.mxu0 0
  %45 = vmatprep.subr.bf16.mxu0 0
  %46 = vmatpush1.bf16.msra.mxu0 0
  %47 = vmatprep.subr.bf16.mxu0 0
  %48 = vmatpush1.bf16.msra.mxu0 0
  %49 = vmatprep.subr.bf16.mxu0 0
  %50 = vmatpush1.bf16.msra.mxu0 %v32
  %51 = vmatprep.subr.bf16.mxu0 0
  %52 = vmatpush1.bf16.msra.mxu0 %v31
  %53 = vmatprep.subr.bf16.mxu0 0
  %54 = vmatpush2.bf16.msra.mxu0 0
  %55 = vmatprep.subr.bf16.mxu0 0
  %56 = vmatpush2.bf16.msra.mxu0 0
  %57 = vmatprep.subr.bf16.mxu0 0
  %58 = vmatpush2.bf16.msra.mxu0 0
  %59 = vmatprep.subr.bf16.mxu0 0
  %60 = vmatpush2.bf16.msra.mxu0 0
  %61 = vmatprep.subr.bf16.mxu0 0
  %62 = vmatpush2.bf16.msra.mxu0 0
  %63 = vmatprep.subr.bf16.mxu0 0
  %64 = vmatpush2.bf16.msra.mxu0 0
  %65 = vmatprep.subr.bf16.mxu0 0
  %66 = vmatpush2.bf16.msra.mxu0 0
  %67 = vmatprep.subr.bf16.mxu0 0
  %68 = vmatpush2.bf16.msra.mxu0 0
  %69 = vmatprep.mubr.bf16.mxu0 0
  %70 = vmatmul.mubr.bf16.gmra.mxu0 %v35
  %v71 = vpop.f32.mrf.mxu0
  %v72 = vadd.f32 0.0, %v71
  %v73 = vpop.f32.mrf.mxu0
  %v74 = vpop.f32.mrf.mxu0
  %v75 = vadd.f32 0.0, %v74
  %v76 = vpop.f32.mrf.mxu0
  %77 = vdwg.mxu0
  %v78 = vadd.f32 %v22, %v72
  %v79 = vadd.f32 %v23, %v75
  %vm80 = vcmask 785408
  %81 = vst.msk [vmem:[#allocation2] sm:$0xff] %vm80, %v78
  %82 = vst.msk [vmem:[#allocation2 + $0x8] sm:$0xff] %vm80, %v79
  // Predicated region
  $region18: #{encoder_forward.12} parent=0 // pred_check
    %p83 = pneg %p15
  $region19: #{encoder_forward.12} parent=0 // pred_check_branch
    %85 = sbr.rel (%p83) target = $region21
  $region20: #{encoder_forward.12} parent=0 // pred_region
    %v86 = vld [vmem:[#allocation2] sm:$0xff]
    %v87 = vld [vmem:[#allocation2 + $0x8] sm:$0xff]
    %v88 = vld [vmem:[%s2] sm:$0x1]
    %v90 = vlaneseq
    %v91 = vshrl.u32 %v90, 7
    %v92 = vsub.s32 0, %v91
    %v93 = vrot.slane %v88, %v92
    %v95 = vadd.f32 %v86, %v93
    %v96 = vadd.f32 %v87, %v93
    %97 = vst.msk [vmem:[%s3] sm:$0xff] %vm80, %v95
    %98 = vst.msk [vmem:[%s3 + $0x8] sm:$0xff] %vm80, %v96
  $region21: #{encoder_forward.12} parent=0 // pred_fallthru
    _
  // Predicated region
  $region22: #{encoder_forward.12} parent=0 // pred_check
    _
  $region23: #{encoder_forward.12} parent=0 // pred_check_branch
    %100 = sbr.rel (0) target = $region25
  $region24: #{encoder_forward.12} parent=0 // pred_region
    _
  $region25: #{encoder_forward.12} parent=0 // pred_fallthru
    _
  // Predicated region
  $region26: #{encoder_forward.12} parent=0 // pred_check
    _
  $region27: #{encoder_forward.12} parent=0 // pred_check_branch
    %102 = sbr.rel (0) target = $region29
  $region28: #{encoder_forward.12} parent=0 // pred_region
    _
  $region29: #{encoder_forward.12} parent=0 // pred_fallthru
    _

// kernel: encoder_forward.11
$region0: #{encoder_forward.11}
  #allocation0 [shape = 'u32[]', space=smem, size = 0x4, offset = 0x4, fixed_abs, tag = 'smem constant byte address 0x4 - core index']
  #allocation1 [shape = 'u32[144,128]{1,0:T(1,128)}', space=vmem, size = 0x12000, scoped, tag = 'internal scratch']
  #allocation2 [shape = 'f32[16,32]{1,0:T(8,128)}', space=vmem, size = 0x2000, scoped, tag = 'scratch operand']
  %s0 = inlined_call_operand.vmem [shape: f32[16,32], index: 0, kind: input, shape index: {}]
  %s1 = inlined_call_operand.vmem [shape: f32[32,128], index: 1, kind: input, shape index: {}]
  %s2 = inlined_call_operand.vmem [shape: f32[1,128], index: 2, kind: input, shape index: {}]
  %s3 = inlined_call_operand.vmem [shape: f32[128,32], index: 3, kind: input, shape index: {}]
  %s4 = inlined_call_operand.vmem [shape: f32[1,32], index: 4, kind: input, shape index: {}]
  %s5 = inlined_call_operand.vmem [shape: f32[1,32], index: 5, kind: input, shape index: {}]
  %s6 = inlined_call_operand.vmem [shape: f32[1,32], index: 6, kind: input, shape index: {}]
  %s7 = inlined_call_operand.vmem [shape: f32[16,32], index: 7, kind: output, shape index: {}]
  %s8 = sld [smem:[#allocation0]]
  $region46: #{encoder_forward.11} parent=0
    _
  %s10 = ssub.s32 1, %s8
  %s11 = scalar_select 0, %s10, %s8
  // Predicated region
  $region2: #{encoder_forward.11} parent=0 // pred_check
    _
  $region3: #{encoder_forward.11} parent=0 // pred_check_branch
    %13 = sbr.rel (0) target = $region5
  $region4: #{encoder_forward.11} parent=0 // pred_region
    _
  $region5: #{encoder_forward.11} parent=0 // pred_fallthru
    _
  // Predicated region
  $region6: #{encoder_forward.11} parent=0 // pred_check
    _
  $region7: #{encoder_forward.11} parent=0 // pred_check_branch
    %15 = sbr.rel (0) target = $region9
  $region8: #{encoder_forward.11} parent=0 // pred_region
    _
  $region9: #{encoder_forward.11} parent=0 // pred_fallthru
    _
  // Predicated region
  $region10: #{encoder_forward.11} parent=0 // pred_check
    _
  $region11: #{encoder_forward.11} parent=0 // pred_check_branch
    %17 = sbr.rel (0) target = $region13
  $region12: #{encoder_forward.11} parent=0 // pred_region
    _
  $region13: #{encoder_forward.11} parent=0 // pred_fallthru
    _
  // Predicated region
  $region14: #{encoder_forward.11} parent=0 // pred_check
    _
  $region15: #{encoder_forward.11} parent=0 // pred_check_branch
    %19 = sbr.rel (0) target = $region17
  $region16: #{encoder_forward.11} parent=0 // pred_region
    _
  $region17: #{encoder_forward.11} parent=0 // pred_fallthru
    _
  // Predicated region
  $region18: #{encoder_forward.11} parent=0 // pred_check
    _
  $region19: #{encoder_forward.11} parent=0 // pred_check_branch
    %21 = sbr.rel (0) target = $region21
  $region20: #{encoder_forward.11} parent=0 // pred_region
    _
  $region21: #{encoder_forward.11} parent=0 // pred_fallthru
    _
  // Predicated region
  $region22: #{encoder_forward.11} parent=0 // pred_check
    _
  $region23: #{encoder_forward.11} parent=0 // pred_check_branch
    %23 = sbr.rel (0) target = $region25
  $region24: #{encoder_forward.11} parent=0 // pred_region
    _
  $region25: #{encoder_forward.11} parent=0 // pred_fallthru
    _
  // Predicated region
  $region26: #{encoder_forward.11} parent=0 // pred_check
    _
  $region27: #{encoder_forward.11} parent=0 // pred_check_branch
    %25 = sbr.rel (0) target = $region29
  $region28: #{encoder_forward.11} parent=0 // pred_region
    _
  $region29: #{encoder_forward.11} parent=0 // pred_fallthru
    _
  %p27 = scmp.eq.s32.totalorder 0, 0
  // Predicated region
  $region30: #{encoder_forward.11} parent=0 // pred_check
    %p28 = pneg %p27
  $region31: #{encoder_forward.11} parent=0 // pred_check_branch
    %30 = sbr.rel (%p28) target = $region33
  $region32: #{encoder_forward.11} parent=0 // pred_region
    %vm31 = vcmask 261120
    %32 = vst.msk [vmem:[#allocation2] sm:$0xff] %vm31, 0.0
    %33 = vst.msk [vmem:[#allocation2 + $0x8] sm:$0xff] %vm31, 0.0
  $region33: #{encoder_forward.11} parent=0 // pred_fallthru
    _
  %v34 = vld [vmem:[%s0] sm:$0xff]
  %v35 = vld [vmem:[%s0 + $0x8] sm:$0xff]
  %v36 = vpack.c.bf16 %v35, %v34
  %v37 = vld [vmem:[%s1] sm:$0xff]
  %v38 = vld [vmem:[%s1 + $0x8] sm:$0xff]
  %v39 = vld [vmem:[%s1 + $0x10] sm:$0xff]
  %v40 = vld [vmem:[%s1 + $0x18] sm:$0xff]
  %v41 = vpack.c.bf16 %v38, %v37
  %v42 = vpack.c.bf16 %v40, %v39
  %v43 = vld [vmem:[%s2] sm:$0x1]
  %v45 = vlaneseq
  %v46 = vshrl.u32 %v45, 7
  %v47 = vsub.s32 0, %v46
  %v48 = vrot.slane %v43, %v47
  %vm50 = vcmask 261120
  %v52 = vsel %vm50, %v36, 0
  %54 = vmatprep.subr.bf16.mxu0 0
  %55 = vmatpush1.bf16.msra.mxu0 0
  %56 = vmatprep.subr.bf16.mxu0 0
  %57 = vmatpush1.bf16.msra.mxu0 0
  %58 = vmatprep.subr.bf16.mxu0 0
  %59 = vmatpush1.bf16.msra.mxu0 0
  %60 = vmatprep.subr.bf16.mxu0 0
  %61 = vmatpush1.bf16.msra.mxu0 0
  %62 = vmatprep.subr.bf16.mxu0 0
  %63 = vmatpush1.bf16.msra.mxu0 0
  %64 = vmatprep.subr.bf16.mxu0 0
  %65 = vmatpush1.bf16.msra.mxu0 0
  %66 = vmatprep.subr.bf16.mxu0 0
  %67 = vmatpush1.bf16.msra.mxu0 %v42
  %68 = vmatprep.subr.bf16.mxu0 0
  %69 = vmatpush1.bf16.msra.mxu0 %v41
  %70 = vmatprep.subr.bf16.mxu0 0
  %71 = vmatpush2.bf16.msra.mxu0 0
  %72 = vmatprep.subr.bf16.mxu0 0
  %73 = vmatpush2.bf16.msra.mxu0 0
  %74 = vmatprep.subr.bf16.mxu0 0
  %75 = vmatpush2.bf16.msra.mxu0 0
  %76 = vmatprep.subr.bf16.mxu0 0
  %77 = vmatpush2.bf16.msra.mxu0 0
  %78 = vmatprep.subr.bf16.mxu0 0
  %79 = vmatpush2.bf16.msra.mxu0 0
  %80 = vmatprep.subr.bf16.mxu0 0
  %81 = vmatpush2.bf16.msra.mxu0 0
  %82 = vmatprep.subr.bf16.mxu0 0
  %83 = vmatpush2.bf16.msra.mxu0 0
  %84 = vmatprep.subr.bf16.mxu0 0
  %85 = vmatpush2.bf16.msra.mxu0 0
  %86 = vmatprep.mubr.bf16.mxu0 0
  %87 = vmatmul.mubr.bf16.gmra.mxu0 %v52
  %v88 = vpop.f32.mrf.mxu0
  %v89 = vadd.f32 %v48, %v88
  %v90 = vpop.f32.mrf.mxu0
  %v91 = vpop.f32.mrf.mxu0
  %v92 = vadd.f32 %v48, %v91
  %v93 = vpop.f32.mrf.mxu0
  %94 = vdwg.mxu0
  %v95 = vmax.f32 %v89, 0.0
  %v96 = vmax.f32 %v92, 0.0
  %v97 = vld [vmem:[#allocation2] sm:$0xff]
  %v98 = vld [vmem:[#allocation2 + $0x8] sm:$0xff]
  %v99 = vpack.c.bf16 %v96, %v95
  %v100 = vld [vmem:[%s3] sm:$0xff]
  %v101 = vld [vmem:[%s3 + $0x8] sm:$0xff]
  %v102 = vld [vmem:[%s3 + $0x10] sm:$0xff]
  %v103 = vld [vmem:[%s3 + $0x18] sm:$0xff]
  %v104 = vld [vmem:[%s3 + $0x20] sm:$0xff]
  %v105 = vld [vmem:[%s3 + $0x28] sm:$0xff]
  %v106 = vld [vmem:[%s3 + $0x30] sm:$0xff]
  %v107 = vld [vmem:[%s3 + $0x38] sm:$0xff]
  %v108 = vld [vmem:[%s3 + $0x40] sm:$0xff]
  %v109 = vld [vmem:[%s3 + $0x48] sm:$0xff]
  %v110 = vld [vmem:[%s3 + $0x50] sm:$0xff]
  %v111 = vld [vmem:[%s3 + $0x58] sm:$0xff]
  %v112 = vld [vmem:[%s3 + $0x60] sm:$0xff]
  %v113 = vld [vmem:[%s3 + $0x68] sm:$0xff]
  %v114 = vld [vmem:[%s3 + $0x70] sm:$0xff]
  %v115 = vld [vmem:[%s3 + $0x78] sm:$0xff]
  %v116 = vpack.c.bf16 %v101, %v100
  %v117 = vpack.c.bf16 %v103, %v102
  %v118 = vpack.c.bf16 %v105, %v104
  %v119 = vpack.c.bf16 %v107, %v106
  %v120 = vpack.c.bf16 %v109, %v108
  %v121 = vpack.c.bf16 %v111, %v110
  %v122 = vpack.c.bf16 %v113, %v112
  %v123 = vpack.c.bf16 %v115, %v114
  %124 = vmatprep.subr.bf16.mxu0 0
  %125 = vmatpush1.bf16.msra.mxu0 %v123
  %126 = vmatprep.subr.bf16.mxu0 0
  %127 = vmatpush1.bf16.msra.mxu0 %v122
  %128 = vmatprep.subr.bf16.mxu0 0
  %129 = vmatpush1.bf16.msra.mxu0 %v121
  %130 = vmatprep.subr.bf16.mxu0 0
  %131 = vmatpush1.bf16.msra.mxu0 %v120
  %132 = vmatprep.subr.bf16.mxu0 0
  %133 = vmatpush1.bf16.msra.mxu0 %v119
  %134 = vmatprep.subr.bf16.mxu0 0
  %135 = vmatpush1.bf16.msra.mxu0 %v118
  %136 = vmatprep.subr.bf16.mxu0 0
  %137 = vmatpush1.bf16.msra.mxu0 %v117
  %138 = vmatprep.subr.bf16.mxu0 0
  %139 = vmatpush1.bf16.msra.mxu0 %v116
  %140 = vmatprep.subr.bf16.mxu0 0
  %141 = vmatpush2.bf16.msra.mxu0 0
  %142 = vmatprep.subr.bf16.mxu0 0
  %143 = vmatpush2.bf16.msra.mxu0 0
  %144 = vmatprep.subr.bf16.mxu0 0
  %145 = vmatpush2.bf16.msra.mxu0 0
  %146 = vmatprep.subr.bf16.mxu0 0
  %147 = vmatpush2.bf16.msra.mxu0 0
  %148 = vmatprep.subr.bf16.mxu0 0
  %149 = vmatpush2.bf16.msra.mxu0 0
  %150 = vmatprep.subr.bf16.mxu0 0
  %151 = vmatpush2.bf16.msra.mxu0 0
  %152 = vmatprep.subr.bf16.mxu0 0
  %153 = vmatpush2.bf16.msra.mxu0 0
  %154 = vmatprep.subr.bf16.mxu0 0
  %155 = vmatpush2.bf16.msra.mxu0 0
  %156 = vmatprep.mubr.bf16.mxu0 0
  %157 = vmatmul.mubr.bf16.gmra.mxu0 %v99
  %v158 = vpop.f32.mrf.mxu0
  %v159 = vadd.f32 0.0, %v158
  %v160 = vpop.f32.mrf.mxu0
  %v161 = vpop.f32.mrf.mxu0
  %v162 = vadd.f32 0.0, %v161
  %v163 = vpop.f32.mrf.mxu0
  %164 = vdwg.mxu0
  %v165 = vadd.f32 %v97, %v159
  %v166 = vadd.f32 %v98, %v162
  %167 = vst.msk [vmem:[#allocation2] sm:$0xff] %vm50, %v165
  %168 = vst.msk [vmem:[#allocation2 + $0x8] sm:$0xff] %vm50, %v166
  // Predicated region
  $region34: #{encoder_forward.11} parent=0 // pred_check
    %p169 = pneg %p27
  $region35: #{encoder_forward.11} parent=0 // pred_check_branch
    %171 = sbr.rel (%p169) target = $region37
  $region36: #{encoder_forward.11} parent=0 // pred_region
    %v172 = vld [vmem:[#allocation2] sm:$0xff]
    %v173 = vld [vmem:[#allocation2 + $0x8] sm:$0xff]
    %v174 = vld [vmem:[%s4] sm:$0x1]
    %v176 = vlaneseq
    %v177 = vshrl.u32 %v176, 7
    %v178 = vsub.s32 0, %v177
    %v179 = vrot.slane %v174, %v178
    %v181 = vadd.f32 %v172, %v179
    %v182 = vadd.f32 %v173, %v179
    %v183 = vld [vmem:[%s0] sm:$0xff]
    %v184 = vld [vmem:[%s0 + $0x8] sm:$0xff]
    %v185 = vadd.f32 %v181, %v183
    %v186 = vadd.f32 %v182, %v184
    %v187 = vsel %vm50, %v185, 0.0
    %188 = vadd.xlane.f32.xlu0 %v187
    %v189 = vpop.xlane.xlu0 %188
    %v190 = vsel %vm50, %v186, 0.0
    %191 = vadd.xlane.f32.xlu0 %v190
    %v192 = vpop.xlane.xlu0 %191
    %v193 = vrcp.pop 32.0
    %v194 = vmul.f32 %v189, %v193
    %v195 = vmul.f32 %v192, %v193
    %v196 = vsub.f32 %v185, %v194
    %v197 = vsub.f32 %v186, %v195
    %v198 = vmul.f32 %v196, %v196
    %v199 = vmul.f32 %v197, %v197
    %v200 = vsel %vm50, %v198, 0.0
    %201 = vadd.xlane.f32.xlu0 %v200
    %v202 = vpop.xlane.xlu0 %201
    %v203 = vsel %vm50, %v199, 0.0
    %204 = vadd.xlane.f32.xlu0 %v203
    %v205 = vpop.xlane.xlu0 %204
    %v206 = vmul.f32 %v202, %v193
    %v207 = vmul.f32 %v205, %v193
    %v208 = vadd.f32 %v206, 1e-05
    %v209 = vadd.f32 %v207, 1e-05
    %v210 = vrsqrt.pop %v208
    %v211 = vrsqrt.pop %v209
    %v212 = vmul.f32 %v196, %v210
    %v213 = vmul.f32 %v197, %v211
    %v214 = vld [vmem:[%s5] sm:$0x1]
    %v216 = vlaneseq
    %v217 = vshrl.u32 %v216, 7
    %v218 = vsub.s32 0, %v217
    %v219 = vrot.slane %v214, %v218
    %v221 = vmul.f32 %v212, %v219
    %v222 = vmul.f32 %v213, %v219
    %v223 = vld [vmem:[%s6] sm:$0x1]
    %v225 = vlaneseq
    %v226 = vshrl.u32 %v225, 7
    %v227 = vsub.s32 0, %v226
    %v228 = vrot.slane %v223, %v227
    %v230 = vadd.f32 %v221, %v228
    %v231 = vadd.f32 %v222, %v228
    %232 = vst.msk [vmem:[%s7] sm:$0xff] %vm50, %v230
    %233 = vst.msk [vmem:[%s7 + $0x8] sm:$0xff] %vm50, %v231
  $region37: #{encoder_forward.11} parent=0 // pred_fallthru
    _
  // Predicated region
  $region38: #{encoder_forward.11} parent=0 // pred_check
    _
  $region39: #{encoder_forward.11} parent=0 // pred_check_branch
    %235 = sbr.rel (0) target = $region41
  $region40: #{encoder_forward.11} parent=0 // pred_region
    _
  $region41: #{encoder_forward.11} parent=0 // pred_fallthru
    _
  // Predicated region
  $region42: #{encoder_forward.11} parent=0 // pred_check
    _
  $region43: #{encoder_forward.11} parent=0 // pred_check_branch
    %237 = sbr.rel (0) target = $region45
  $region44: #{encoder_forward.11} parent=0 // pred_region
    _
  $region45: #{encoder_forward.11} parent=0 // pred_fallthru
    _

// kernel: encoder_forward.15
$region0: #{encoder_forward.15}
  #allocation0 [shape = 'u32[]', space=smem, size = 0x4, offset = 0x4, fixed_abs, tag = 'smem constant byte address 0x4 - core index']
  #allocation1 [shape = 'u32[144,128]{1,0:T(1,128)}', space=vmem, size = 0x12000, scoped, tag = 'internal scratch']
  #allocation2 [shape = 'f32[16,32]{1,0:T(8,128)}', space=vmem, size = 0x2000, scoped, tag = 'scratch operand']
  %s0 = inlined_call_operand.vmem [shape: f32[16,32], index: 0, kind: input, shape index: {}]
  %s1 = inlined_call_operand.vmem [shape: f32[32,128], index: 1, kind: input, shape index: {}]
  %s2 = inlined_call_operand.vmem [shape: f32[1,128], index: 2, kind: input, shape index: {}]
  %s3 = inlined_call_operand.vmem [shape: f32[128,32], index: 3, kind: input, shape index: {}]
  %s4 = inlined_call_operand.vmem [shape: f32[1,32], index: 4, kind: input, shape index: {}]
  %s5 = inlined_call_operand.vmem [shape: f32[1,32], index: 5, kind: input, shape index: {}]
  %s6 = inlined_call_operand.vmem [shape: f32[1,32], index: 6, kind: input, shape index: {}]
  %s7 = inlined_call_operand.hbm [shape: f32[16,32], index: 7, kind: output, shape index: {}]
  %s8 = sld [smem:[#allocation0]]
  $region46: #{encoder_forward.15} parent=0
    _
  %s10 = ssub.s32 1, %s8
  %s11 = scalar_select 0, %s10, %s8
  $region1: #{encoder_forward.15} parent=0
    #allocation3 [shape = 'u8[8192]{0}', space=vmem, size = 0x2000, scoped, tag = 'output window, operand 0, single buffered']
    #allocation4 [shape = 's32[1]{0}', space=sflag, size = 0x4, scoped, tag = 'scoped memory for encoder_forward.15']
    %12 = vsyncpa [#allocation4], 0
    // Predicated region
    $region2: #{encoder_forward.15} parent=1 // pred_check
      _
    $region3: #{encoder_forward.15} parent=1 // pred_check_branch
      %14 = sbr.rel (0) target = $region5
    $region4: #{encoder_forward.15} parent=1 // pred_region
      _
    $region5: #{encoder_forward.15} parent=1 // pred_fallthru
      _
    // Predicated region
    $region6: #{encoder_forward.15} parent=1 // pred_check
      _
    $region7: #{encoder_forward.15} parent=1 // pred_check_branch
      %16 = sbr.rel (0) target = $region9
    $region8: #{encoder_forward.15} parent=1 // pred_region
      _
    $region9: #{encoder_forward.15} parent=1 // pred_fallthru
      _
    // Predicated region
    $region10: #{encoder_forward.15} parent=1 // pred_check
      _
    $region11: #{encoder_forward.15} parent=1 // pred_check_branch
      %18 = sbr.rel (0) target = $region13
    $region12: #{encoder_forward.15} parent=1 // pred_region
      _
    $region13: #{encoder_forward.15} parent=1 // pred_fallthru
      _
    // Predicated region
    $region14: #{encoder_forward.15} parent=1 // pred_check
      _
    $region15: #{encoder_forward.15} parent=1 // pred_check_branch
      %20 = sbr.rel (0) target = $region17
    $region16: #{encoder_forward.15} parent=1 // pred_region
      _
    $region17: #{encoder_forward.15} parent=1 // pred_fallthru
      _
    // Predicated region
    $region18: #{encoder_forward.15} parent=1 // pred_check
      _
    $region19: #{encoder_forward.15} parent=1 // pred_check_branch
      %22 = sbr.rel (0) target = $region21
    $region20: #{encoder_forward.15} parent=1 // pred_region
      _
    $region21: #{encoder_forward.15} parent=1 // pred_fallthru
      _
    // Predicated region
    $region22: #{encoder_forward.15} parent=1 // pred_check
      _
    $region23: #{encoder_forward.15} parent=1 // pred_check_branch
      %24 = sbr.rel (0) target = $region25
    $region24: #{encoder_forward.15} parent=1 // pred_region
      _
    $region25: #{encoder_forward.15} parent=1 // pred_fallthru
      _
    // Predicated region
    $region26: #{encoder_forward.15} parent=1 // pred_check
      _
    $region27: #{encoder_forward.15} parent=1 // pred_check_branch
      %26 = sbr.rel (0) target = $region29
    $region28: #{encoder_forward.15} parent=1 // pred_region
      _
    $region29: #{encoder_forward.15} parent=1 // pred_fallthru
      _
    %p28 = scmp.eq.s32.totalorder 0, 0
    // Predicated region
    $region30: #{encoder_forward.15} parent=1 // pred_check
      %p29 = pneg %p28
    $region31: #{encoder_forward.15} parent=1 // pred_check_branch
      %31 = sbr.rel (%p29) target = $region33
    $region32: #{encoder_forward.15} parent=1 // pred_region
      %vm32 = vcmask 261120
      %33 = vst.msk [vmem:[#allocation2] sm:$0xff] %vm32, 0.0
      %34 = vst.msk [vmem:[#allocation2 + $0x8] sm:$0xff] %vm32, 0.0
    $region33: #{encoder_forward.15} parent=1 // pred_fallthru
      _
    %v35 = vld [vmem:[%s0] sm:$0xff]
    %v36 = vld [vmem:[%s0 + $0x8] sm:$0xff]
    %v37 = vpack.c.bf16 %v36, %v35
    %v38 = vld [vmem:[%s1] sm:$0xff]
    %v39 = vld [vmem:[%s1 + $0x8] sm:$0xff]
    %v40 = vld [vmem:[%s1 + $0x10] sm:$0xff]
    %v41 = vld [vmem:[%s1 + $0x18] sm:$0xff]
    %v42 = vpack.c.bf16 %v39, %v38
    %v43 = vpack.c.bf16 %v41, %v40
    %v44 = vld [vmem:[%s2] sm:$0x1]
    %v46 = vlaneseq
    %v47 = vshrl.u32 %v46, 7
    %v48 = vsub.s32 0, %v47
    %v49 = vrot.slane %v44, %v48
    %vm51 = vcmask 261120
    %v53 = vsel %vm51, %v37, 0
    %55 = vmatprep.subr.bf16.mxu0 0
    %56 = vmatpush1.bf16.msra.mxu0 0
    %57 = vmatprep.subr.bf16.mxu0 0
    %58 = vmatpush1.bf16.msra.mxu0 0
    %59 = vmatprep.subr.bf16.mxu0 0
    %60 = vmatpush1.bf16.msra.mxu0 0
    %61 = vmatprep.subr.bf16.mxu0 0
    %62 = vmatpush1.bf16.msra.mxu0 0
    %63 = vmatprep.subr.bf16.mxu0 0
    %64 = vmatpush1.bf16.msra.mxu0 0
    %65 = vmatprep.subr.bf16.mxu0 0
    %66 = vmatpush1.bf16.msra.mxu0 0
    %67 = vmatprep.subr.bf16.mxu0 0
    %68 = vmatpush1.bf16.msra.mxu0 %v43
    %69 = vmatprep.subr.bf16.mxu0 0
    %70 = vmatpush1.bf16.msra.mxu0 %v42
    %71 = vmatprep.subr.bf16.mxu0 0
    %72 = vmatpush2.bf16.msra.mxu0 0
    %73 = vmatprep.subr.bf16.mxu0 0
    %74 = vmatpush2.bf16.msra.mxu0 0
    %75 = vmatprep.subr.bf16.mxu0 0
    %76 = vmatpush2.bf16.msra.mxu0 0
    %77 = vmatprep.subr.bf16.mxu0 0
    %78 = vmatpush2.bf16.msra.mxu0 0
    %79 = vmatprep.subr.bf16.mxu0 0
    %80 = vmatpush2.bf16.msra.mxu0 0
    %81 = vmatprep.subr.bf16.mxu0 0
    %82 = vmatpush2.bf16.msra.mxu0 0
    %83 = vmatprep.subr.bf16.mxu0 0
    %84 = vmatpush2.bf16.msra.mxu0 0
    %85 = vmatprep.subr.bf16.mxu0 0
    %86 = vmatpush2.bf16.msra.mxu0 0
    %87 = vmatprep.mubr.bf16.mxu0 0
    %88 = vmatmul.mubr.bf16.gmra.mxu0 %v53
    %v89 = vpop.f32.mrf.mxu0
    %v90 = vadd.f32 %v49, %v89
    %v91 = vpop.f32.mrf.mxu0
    %v92 = vpop.f32.mrf.mxu0
    %v93 = vadd.f32 %v49, %v92
    %v94 = vpop.f32.mrf.mxu0
    %95 = vdwg.mxu0
    %v96 = vmax.f32 %v90, 0.0
    %v97 = vmax.f32 %v93, 0.0
    %v98 = vld [vmem:[#allocation2] sm:$0xff]
    %v99 = vld [vmem:[#allocation2 + $0x8] sm:$0xff]
    %v100 = vpack.c.bf16 %v97, %v96
    %v101 = vld [vmem:[%s3] sm:$0xff]
    %v102 = vld [vmem:[%s3 + $0x8] sm:$0xff]
    %v103 = vld [vmem:[%s3 + $0x10] sm:$0xff]
    %v104 = vld [vmem:[%s3 + $0x18] sm:$0xff]
    %v105 = vld [vmem:[%s3 + $0x20] sm:$0xff]
    %v106 = vld [vmem:[%s3 + $0x28] sm:$0xff]
    %v107 = vld [vmem:[%s3 + $0x30] sm:$0xff]
    %v108 = vld [vmem:[%s3 + $0x38] sm:$0xff]
    %v109 = vld [vmem:[%s3 + $0x40] sm:$0xff]
    %v110 = vld [vmem:[%s3 + $0x48] sm:$0xff]
    %v111 = vld [vmem:[%s3 + $0x50] sm:$0xff]
    %v112 = vld [vmem:[%s3 + $0x58] sm:$0xff]
    %v113 = vld [vmem:[%s3 + $0x60] sm:$0xff]
    %v114 = vld [vmem:[%s3 + $0x68] sm:$0xff]
    %v115 = vld [vmem:[%s3 + $0x70] sm:$0xff]
    %v116 = vld [vmem:[%s3 + $0x78] sm:$0xff]
    %v117 = vpack.c.bf16 %v102, %v101
    %v118 = vpack.c.bf16 %v104, %v103
    %v119 = vpack.c.bf16 %v106, %v105
    %v120 = vpack.c.bf16 %v108, %v107
    %v121 = vpack.c.bf16 %v110, %v109
    %v122 = vpack.c.bf16 %v112, %v111
    %v123 = vpack.c.bf16 %v114, %v113
    %v124 = vpack.c.bf16 %v116, %v115
    %125 = vmatprep.subr.bf16.mxu0 0
    %126 = vmatpush1.bf16.msra.mxu0 %v124
    %127 = vmatprep.subr.bf16.mxu0 0
    %128 = vmatpush1.bf16.msra.mxu0 %v123
    %129 = vmatprep.subr.bf16.mxu0 0
    %130 = vmatpush1.bf16.msra.mxu0 %v122
    %131 = vmatprep.subr.bf16.mxu0 0
    %132 = vmatpush1.bf16.msra.mxu0 %v121
    %133 = vmatprep.subr.bf16.mxu0 0
    %134 = vmatpush1.bf16.msra.mxu0 %v120
    %135 = vmatprep.subr.bf16.mxu0 0
    %136 = vmatpush1.bf16.msra.mxu0 %v119
    %137 = vmatprep.subr.bf16.mxu0 0
    %138 = vmatpush1.bf16.msra.mxu0 %v118
    %139 = vmatprep.subr.bf16.mxu0 0
    %140 = vmatpush1.bf16.msra.mxu0 %v117
    %141 = vmatprep.subr.bf16.mxu0 0
    %142 = vmatpush2.bf16.msra.mxu0 0
    %143 = vmatprep.subr.bf16.mxu0 0
    %144 = vmatpush2.bf16.msra.mxu0 0
    %145 = vmatprep.subr.bf16.mxu0 0
    %146 = vmatpush2.bf16.msra.mxu0 0
    %147 = vmatprep.subr.bf16.mxu0 0
    %148 = vmatpush2.bf16.msra.mxu0 0
    %149 = vmatprep.subr.bf16.mxu0 0
    %150 = vmatpush2.bf16.msra.mxu0 0
    %151 = vmatprep.subr.bf16.mxu0 0
    %152 = vmatpush2.bf16.msra.mxu0 0
    %153 = vmatprep.subr.bf16.mxu0 0
    %154 = vmatpush2.bf16.msra.mxu0 0
    %155 = vmatprep.subr.bf16.mxu0 0
    %156 = vmatpush2.bf16.msra.mxu0 0
    %157 = vmatprep.mubr.bf16.mxu0 0
    %158 = vmatmul.mubr.bf16.gmra.mxu0 %v100
    %v159 = vpop.f32.mrf.mxu0
    %v160 = vadd.f32 0.0, %v159
    %v161 = vpop.f32.mrf.mxu0
    %v162 = vpop.f32.mrf.mxu0
    %v163 = vadd.f32 0.0, %v162
    %v164 = vpop.f32.mrf.mxu0
    %165 = vdwg.mxu0
    %v166 = vadd.f32 %v98, %v160
    %v167 = vadd.f32 %v99, %v163
    %168 = vst.msk [vmem:[#allocation2] sm:$0xff] %vm51, %v166
    %169 = vst.msk [vmem:[#allocation2 + $0x8] sm:$0xff] %vm51, %v167
    // Predicated region
    $region34: #{encoder_forward.15} parent=1 // pred_check
      %p170 = pneg %p28
    $region35: #{encoder_forward.15} parent=1 // pred_check_branch
      %172 = sbr.rel (%p170) target = $region37
    $region36: #{encoder_forward.15} parent=1 // pred_region
      %v173 = vld [vmem:[#allocation2] sm:$0xff]
      %v174 = vld [vmem:[#allocation2 + $0x8] sm:$0xff]
      %v175 = vld [vmem:[%s4] sm:$0x1]
      %v177 = vlaneseq
      %v178 = vshrl.u32 %v177, 7
      %v179 = vsub.s32 0, %v178
      %v180 = vrot.slane %v175, %v179
      %v182 = vadd.f32 %v173, %v180
      %v183 = vadd.f32 %v174, %v180
      %v184 = vld [vmem:[%s0] sm:$0xff]
      %v185 = vld [vmem:[%s0 + $0x8] sm:$0xff]
      %v186 = vadd.f32 %v182, %v184
      %v187 = vadd.f32 %v183, %v185
      %v188 = vsel %vm51, %v186, 0.0
      %189 = vadd.xlane.f32.xlu0 %v188
      %v190 = vpop.xlane.xlu0 %189
      %v191 = vsel %vm51, %v187, 0.0
      %192 = vadd.xlane.f32.xlu0 %v191
      %v193 = vpop.xlane.xlu0 %192
      %v194 = vrcp.pop 32.0
      %v195 = vmul.f32 %v190, %v194
      %v196 = vmul.f32 %v193, %v194
      %v197 = vsub.f32 %v186, %v195
      %v198 = vsub.f32 %v187, %v196
      %v199 = vmul.f32 %v197, %v197
      %v200 = vmul.f32 %v198, %v198
      %v201 = vsel %vm51, %v199, 0.0
      %202 = vadd.xlane.f32.xlu0 %v201
      %v203 = vpop.xlane.xlu0 %202
      %v204 = vsel %vm51, %v200, 0.0
      %205 = vadd.xlane.f32.xlu0 %v204
      %v206 = vpop.xlane.xlu0 %205
      %v207 = vmul.f32 %v203, %v194
      %v208 = vmul.f32 %v206, %v194
      %v209 = vadd.f32 %v207, 1e-05
      %v210 = vadd.f32 %v208, 1e-05
      %v211 = vrsqrt.pop %v209
      %v212 = vrsqrt.pop %v210
      %v213 = vmul.f32 %v197, %v211
      %v214 = vmul.f32 %v198, %v212
      %v215 = vld [vmem:[%s5] sm:$0x1]
      %v217 = vlaneseq
      %v218 = vshrl.u32 %v217, 7
      %v219 = vsub.s32 0, %v218
      %v220 = vrot.slane %v215, %v219
      %v222 = vmul.f32 %v213, %v220
      %v223 = vmul.f32 %v214, %v220
      %v224 = vld [vmem:[%s6] sm:$0x1]
      %v226 = vlaneseq
      %v227 = vshrl.u32 %v226, 7
      %v228 = vsub.s32 0, %v227
      %v229 = vrot.slane %v224, %v228
      %v231 = vadd.f32 %v222, %v229
      %v232 = vadd.f32 %v223, %v229
      %233 = vst.msk [vmem:[#allocation3] sm:$0xff] %vm51, %v231
      %234 = vst.msk [vmem:[#allocation3 + $0x8] sm:$0xff] %vm51, %v232
    $region37: #{encoder_forward.15} parent=1 // pred_fallthru
      _
    // Predicated region
    $region38: #{encoder_forward.15} parent=1 // pred_check
      _
    $region39: #{encoder_forward.15} parent=1 // pred_check_branch
      %236 = sbr.rel (0) target = $region41
    $region40: #{encoder_forward.15} parent=1 // pred_region
      %s238 = ssub.s32 256, 256
      %239 = vsyncadd [#allocation4], %s238
      %s240 = sshll.u32 [#allocation3], 4
      %s241 = int_to_ptr.vmem [resolvable:$true] %s240
      %246 = dma.vmem_to_hbm [thread:$0]  %s241, 256, %s7, [#allocation4], 128, 128, 8
    $region41: #{encoder_forward.15} parent=1 // pred_fallthru
      _
    // Predicated region
    $region42: #{encoder_forward.15} parent=1 // pred_check
      _
    $region43: #{encoder_forward.15} parent=1 // pred_check_branch
      %248 = sbr.rel (0) target = $region45
    $region44: #{encoder_forward.15} parent=1 // pred_region
      %249 = dma.done [#allocation4], 256
    $region45: #{encoder_forward.15} parent=1 // pred_fallthru
      _
    %250 = vsyncpa [#allocation4], 1

</llo_original>
